<compile_context>
chip_gen: v6e
topology: v6e:2x2x1
jax: 0.10.0
libtpu: 0.0.40
codegen_flags: <defaults>
</compile_context>

<pallas_src>
import functools

import numpy as np
import jax
import jax.numpy as jnp
from jax.experimental import pallas as pl
from jax.experimental.pallas import tpu as pltpu


def _round_up(x, m):
    return ((x + m - 1) // m) * m


def _decoder_kernel(*refs, n_s2, bt, s2_dims):
    """Whole decoder forward for one batch tile.

    refs = [z, w1m, b1row,  (wm, brow) * n_s2,   # inputs
            out,                                 # output
            (ap, cols) * n_s2]                   # VMEM scratch

    s2_dims[i] = (H, W, Cin, Cout) of stride-2 layer i (input spatial H x W).
    Activation layout everywhere:  A[y*bt + b, x*C + c] == act[b, y, x, c];
    the padded buffer `ap` has a 1-block (bt rows / Cin cols) zero halo.
    """
    z_ref, w1_ref, b1_ref = refs[0], refs[1], refs[2]
    s2_in = refs[3:3 + 2 * n_s2]
    o_ref = refs[3 + 2 * n_s2]
    scratch = refs[4 + 2 * n_s2:]

    f32, bf16 = jnp.float32, jnp.bfloat16

    # ---- halo-only zeroing (interiors are fully overwritten below) ----------
    for i in range(n_s2):
        h, w, cin, _ = s2_dims[i]
        ap = scratch[2 * i]
        wp = (w + 2) * cin
        ap[0:bt, :] = jnp.zeros((bt, wp), bf16)                          # top
        ap[(h + 1) * bt:(h + 2) * bt, :] = jnp.zeros((bt, wp), bf16)     # bottom
        ap[:, 0:cin] = jnp.zeros(((h + 2) * bt, cin), bf16)              # left
        ap[:, (w + 1) * cin:wp] = jnp.zeros(((h + 2) * bt, cin), bf16)   # right

    # ---- layer 1: ConvTranspose2d(latent -> C1, K, stride=1, pad=0) on a 1x1
    # input == ONE (bt, latent) x (latent, K*K*C1) matmul, then bias + ReLU;
    # each of the K output rows is stored into ap0's interior.
    h0, w0, c0, _ = s2_dims[0]
    ap0 = scratch[0]
    a1 = jnp.dot(z_ref[...].astype(bf16), w1_ref[...], preferred_element_type=f32)
    a1 = jnp.maximum(a1 + b1_ref[...], 0.0).astype(bf16)
    for y in range(h0):
        ap0[(y + 1) * bt:(y + 2) * bt, c0:(w0 + 1) * c0] = \
            a1[:, y * w0 * c0:(y + 1) * w0 * c0]

    # ---- stride-2 layers: phase-decomposed ConvTranspose2d(K=4, s=2, p=1)
    # out[b, 2m+r, 2n+c, co] = bias[co]
    #   + sum_{dy,dx,ci} a_pad[b, m+r+dy, n+c+dx, ci] * w[ci, co, 3-r-2dy, 3-c-2dx]
    # Column taps / x-interleave / both y-phases are folded into wm, so each
    # layer is: 3 contiguous row-shift copies + ONE matmul + strided row stores.
    for i in range(n_s2):
        h, w, cin, cout = s2_dims[i]
        wm_ref, brow_ref = s2_in[2 * i], s2_in[2 * i + 1]
        ap_ref, cols_ref = scratch[2 * i], scratch[2 * i + 1]
        wo = 2 * w
        wp = (w + 2) * cin

        # 3 sublane-aligned, full-width row-shift copies build the im2col slab.
        for oy in range(3):
            cols_ref[:, oy * wp:(oy + 1) * wp] = ap_ref[oy * bt:(oy + h) * bt, :]

        # One MXU pass; both y-phases land side-by-side in 2*Wo*Cout lanes:
        #   pre[m*bt + b, r*Wo*Cout + xo*Cout + co] == out[b, 2m+r, xo, co]
        pre = jnp.dot(cols_ref[...], wm_ref[...], preferred_element_type=f32)
        pre = pre + brow_ref[...]

        if i + 1 < n_s2:
            nh, nw, ncin, _ = s2_dims[i + 1]          # == (2h, 2w, cout, .)
            act = jnp.maximum(pre, 0.0).astype(bf16)  # ReLU
            nxt = scratch[2 * (i + 1)]
            # Direct strided row-block stores (replace the old permutation matmuls).
            for m in range(h):
                for r in (0, 1):
                    nxt[(2 * m + r + 1) * bt:(2 * m + r + 2) * bt,
                        ncin:(nw + 1) * ncin] = \
                        act[m * bt:(m + 1) * bt,
                            r * wo * cout:(r + 1) * wo * cout]
        else:
            # nn.Sigmoid() inside the last layer + torch.sigmoid() in forward().
            s_in = pl.reciprocal(1.0 + jnp.exp(-pre), approx=False)
            o_ref[0] = pl.reciprocal(1.0 + jnp.exp(-s_in),
                                     approx=True).astype(o_ref.dtype)


def decoder_forward(z, params, layer_cfg):
    """z: (B, latent) f32; params[i] = (w, b) with w in PyTorch ConvTranspose2d
    layout (Cin, Cout, K, K).  Returns the NCHW output of the PyTorch module."""
    B, lat = z.shape
    n_layers = len(layer_cfg)
    assert n_layers >= 2
    c1, k1, s1, p1 = layer_cfg[0]
    assert s1 == 1 and p1 == 0, "first deconv assumed stride=1, padding=0 (1x1 input)"
    for (_, k, s, p) in layer_cfg[1:]:
        assert (k, s, p) == (4, 2, 1), "upsampling layers specialised to K=4, s=2, p=1"
    # TODO(synk): other (kernel, stride, padding) combinations would need a generic
    # in-kernel im2col path; only the module's config (4,1,0)/(4,2,1) is implemented.

    f32, bf16 = jnp.float32, jnp.bfloat16

    # Sublane-aligned batch tile (bf16 scratch => 16-row tiles), capped at 128.
    bt = min(128, _round_up(B, 16))
    t = -(-B // bt)
    b_pad = t * bt
    z_p = jnp.pad(z, ((0, b_pad - B), (0, 0))) if b_pad != B else z

    # ---- host-side weight restructuring (tiny, batch independent) -------------
    w1, b1 = params[0]
    # w1m[ci, y*K*C1 + x*C1 + co] = w1[ci, co, y, x]
    w1m = jnp.transpose(w1, (0, 2, 3, 1)).reshape(lat, k1 * k1 * c1).astype(bf16)
    b1row = jnp.tile(b1, (k1 * k1,)).reshape(1, k1 * k1 * c1).astype(f32)

    inputs = [z_p, w1m, b1row]
    in_specs = [
        pl.BlockSpec((bt, lat), lambda i: (i, 0)),
        pl.BlockSpec(w1m.shape, lambda i: (0, 0)),
        pl.BlockSpec(b1row.shape, lambda i: (0, 0)),
    ]
    scratch_shapes = []
    s2_dims = []

    h = w_sp = k1
    cin = c1
    for li in range(1, n_layers):
        cout = layer_cfg[li][0]
        w_pt, b = params[li]
        wo = 2 * w_sp
        wp = (w_sp + 2) * cin

        # Merged weight matrix: 4 column taps + x-interleave + both y-phases.
        #   WM[oy*wp + (n+ox)*Cin + ci, r*Wo*Cout + (2n+c)*Cout + co]
        #       += w[ci, co, 3+r-2*oy, 3+c-2*ox]   for oy-r in {0,1}, ox-c in {0,1}
        wm = np.zeros((3 * wp, 2 * wo * cout), np.float32)
        w_np = np.asarray(w_pt, np.float32)
        for r in (0, 1):
            for oy in (r, r + 1):                 # dy = oy - r in {0,1}
                ky = 3 + r - 2 * oy
                for c in (0, 1):
                    for ox in (c, c + 1):         # dx = ox - c in {0,1}
                        kx = 3 + c - 2 * ox
                        for n in range(w_sp):
                            row0 = oy * wp + (n + ox) * cin
                            col0 = r * wo * cout + (2 * n + c) * cout
                            wm[row0:row0 + cin, col0:col0 + cout] += w_np[:, :, ky, kx]
        wm = jnp.asarray(wm, bf16)
        brow = jnp.tile(b, (2 * wo,)).reshape(1, 2 * wo * cout).astype(f32)

        inputs += [wm, brow]
        in_specs += [
            pl.BlockSpec(wm.shape, lambda i: (0, 0)),
            pl.BlockSpec(brow.shape, lambda i: (0, 0)),
        ]
        scratch_shapes += [
            pltpu.VMEM(((h + 2) * bt, wp), bf16),   # padded input activation
            pltpu.VMEM((h * bt, 3 * wp), bf16),     # row-shift im2col slab
        ]
        s2_dims.append((h, w_sp, cin, cout))
        h, w_sp, cin = 2 * h, 2 * w_sp, cout

    # Lane-dense output: last layer emits both y-phases side-by-side, i.e.
    #   out[i, m*bt + b, r*Wf*Cf + x*Cf + c] == image[i*bt + b, c, 2m + r, x]
    hl, wf, cf = h // 2, w_sp, cin
    out_cols = 2 * wf * cf
    out_shape = jax.ShapeDtypeStruct((t, hl * bt, out_cols), f32)
    out_spec = pl.BlockSpec((1, hl * bt, out_cols), lambda i: (i, 0, 0))

    kern = functools.partial(_decoder_kernel, n_s2=n_layers - 1, bt=bt,
                             s2_dims=tuple(s2_dims))
    out = pl.pallas_call(
        kern,
        out_shape=out_shape,
        grid_spec=pltpu.PrefetchScalarGridSpec(
            num_scalar_prefetch=0,
            grid=(t,),
            in_specs=in_specs,
            out_specs=out_spec,
            scratch_shapes=scratch_shapes),
        compiler_params=pltpu.CompilerParams(
            dimension_semantics=("parallel",)),
    )(*inputs)

    # (t, Hl*bt, 2*Wf*Cf) -> NCHW (B, Cf, 2*Hl, Wf)
    y = out.reshape(t, hl, bt, 2, wf, cf)
    y = jnp.transpose(y, (0, 2, 5, 1, 3, 4)).reshape(t * bt, cf, 2 * hl, wf)
    return y[:B]


# ---------------- pure-JAX reference (for correctness check) ----------------
def decoder_reference(z, params, layer_cfg):
    x = z.reshape(z.shape[0], 1, 1, z.shape[1])
    n = len(layer_cfg)
    for i, (w, b) in enumerate(params):
        _, _, stride, padding = layer_cfg[i]
        K = w.shape[2]
        w_flip = jnp.transpose(w[:, :, ::-1, ::-1], (2, 3, 0, 1))  # HWIO
        y = jax.lax.conv_general_dilated(
            x, w_flip, window_strides=(1, 1),
            padding=[(K - 1 - padding, K - 1 - padding)] * 2,
            lhs_dilation=(stride, stride),
            dimension_numbers=("NHWC", "HWIO", "NHWC"))
        y = y + b.reshape(1, 1, 1, -1)
        x = jnp.maximum(y, 0.0) if i < n - 1 else jax.nn.sigmoid(jax.nn.sigmoid(y))
    return jnp.transpose(x, (0, 3, 1, 2))


if __name__ == "__main__":
    B = 2
    latent_dimension = 32
    # (out_channels, kernel_size, stride, padding) -- 1x1 -> 4x4 -> 8x8 -> 16x16
    decoder_deconv_layers = [(16, 4, 1, 0), (8, 4, 2, 1), (4, 4, 2, 1)]
    output_dimension = [16, 16, 4]  # [width, height, channels]

    key = jax.random.PRNGKey(0)
    keys = jax.random.split(key, 1 + 2 * len(decoder_deconv_layers))
    z = jax.random.normal(keys[0], (B, latent_dimension), jnp.float32)

    # deterministic parameter init (PyTorch ConvTranspose2d weight layout: Cin,Cout,K,K)
    params = []
    cin = latent_dimension
    for li, (cout, K, s, p) in enumerate(decoder_deconv_layers):
        kw, kb = keys[1 + 2 * li], keys[2 + 2 * li]
        w = 0.1 * jax.random.normal(kw, (cin, cout, K, K), jnp.float32)
        b = 0.1 * jax.random.normal(kb, (cout,), jnp.float32)
        params.append((w, b))
        cin = cout

    out = decoder_forward(z, params, decoder_deconv_layers)
    out = jax.block_until_ready(out)

    expected_shape = (B, output_dimension[2], output_dimension[1], output_dimension[0])
    assert out.shape == expected_shape, out.shape

    # Reference uses the same bf16-rounded weights the kernel consumes, so the
    # comparison isolates kernel indexing/math from parameter quantisation.
    # Remaining differences: bf16 activation casts between layers + the EUP
    # approximate reciprocal in the outer sigmoid -> atol 1e-2 is a large
    # margin on the (0.5, 0.73)-ranged double-sigmoid output.
    params_ref = [(w.astype(jnp.bfloat16).astype(jnp.float32), b) for (w, b) in params]
    ref = decoder_reference(z, params_ref, decoder_deconv_layers)
    np.testing.assert_allclose(np.asarray(out), np.asarray(ref), rtol=0.0, atol=1e-2)

    print("KERNEL_OK")
</pallas_src>

<mosaic_0001>
module attributes {stable_mosaic.version = 11 : i64} {
  func.func @_decoder_kernel(%arg0: i32, %arg1: memref<16x32xf32, #tpu.memory_space<vmem>>, %arg2: memref<32x256xbf16, #tpu.memory_space<vmem>>, %arg3: memref<1x256xf32, #tpu.memory_space<vmem>>, %arg4: memref<288x128xbf16, #tpu.memory_space<vmem>>, %arg5: memref<1x128xf32, #tpu.memory_space<vmem>>, %arg6: memref<240x128xbf16, #tpu.memory_space<vmem>>, %arg7: memref<1x128xf32, #tpu.memory_space<vmem>>, %arg8: memref<1x128x128xf32, #tpu.memory_space<vmem>>, %arg9: memref<96x96xbf16, #tpu.memory_space<vmem>>, %arg10: memref<64x288xbf16, #tpu.memory_space<vmem>>, %arg11: memref<160x80xbf16, #tpu.memory_space<vmem>>, %arg12: memref<128x240xbf16, #tpu.memory_space<vmem>>) attributes {dimension_semantics = [#tpu.dimension_semantics<parallel>], iteration_bounds = array<i64: 1>, scalar_prefetch = 0 : i64, scratch_operands = 4 : i64, tpu.core_type = #tpu.core_type<tc>, window_params = [{transform_indices = @transform_0, window_bounds = array<i64: 16, 32>}, {pipeline_mode = #tpu.pipeline_mode<synchronous>, transform_indices = @transform_1, window_bounds = array<i64: 32, 256>}, {pipeline_mode = #tpu.pipeline_mode<synchronous>, transform_indices = @transform_2, window_bounds = array<i64: 1, 256>}, {pipeline_mode = #tpu.pipeline_mode<synchronous>, transform_indices = @transform_3, window_bounds = array<i64: 288, 128>}, {pipeline_mode = #tpu.pipeline_mode<synchronous>, transform_indices = @transform_4, window_bounds = array<i64: 1, 128>}, {pipeline_mode = #tpu.pipeline_mode<synchronous>, transform_indices = @transform_5, window_bounds = array<i64: 240, 128>}, {pipeline_mode = #tpu.pipeline_mode<synchronous>, transform_indices = @transform_6, window_bounds = array<i64: 1, 128>}, {transform_indices = @transform_7, window_bounds = array<i64: 1, 128, 128>}]} {
    %cst = arith.constant 0.000000e+00 : bf16
    %0 = vector.broadcast %cst : bf16 to vector<16x96xbf16>
    %c0 = arith.constant 0 : index
    %c0_0 = arith.constant 0 : index
    %1 = vector.load %arg9[%c0, %c0_0] : memref<96x96xbf16, #tpu.memory_space<vmem>>, vector<16x96xbf16>
    tpu.vector_store %arg9[%c0, %c0_0], %0 {strides = array<i32>} : memref<96x96xbf16, #tpu.memory_space<vmem>>, vector<16x96xbf16>,
    %cst_1 = arith.constant 0.000000e+00 : bf16
    %2 = vector.broadcast %cst_1 : bf16 to vector<16x96xbf16>
    %c80 = arith.constant 80 : index
    %c0_2 = arith.constant 0 : index
    %3 = vector.load %arg9[%c80, %c0_2] : memref<96x96xbf16, #tpu.memory_space<vmem>>, vector<16x96xbf16>
    tpu.vector_store %arg9[%c80, %c0_2], %2 {strides = array<i32>} : memref<96x96xbf16, #tpu.memory_space<vmem>>, vector<16x96xbf16>,
    %cst_3 = arith.constant 0.000000e+00 : bf16
    %4 = vector.broadcast %cst_3 : bf16 to vector<96x16xbf16>
    %c0_4 = arith.constant 0 : index
    %c0_5 = arith.constant 0 : index
    %5 = vector.load %arg9[%c0_4, %c0_5] : memref<96x96xbf16, #tpu.memory_space<vmem>>, vector<96x16xbf16>
    tpu.vector_store %arg9[%c0_4, %c0_5], %4 {strides = array<i32>} : memref<96x96xbf16, #tpu.memory_space<vmem>>, vector<96x16xbf16>,
    %cst_6 = arith.constant 0.000000e+00 : bf16
    %6 = vector.broadcast %cst_6 : bf16 to vector<96x16xbf16>
    %c0_7 = arith.constant 0 : index
    %c80_8 = arith.constant 80 : index
    %7 = vector.load %arg9[%c0_7, %c80_8] : memref<96x96xbf16, #tpu.memory_space<vmem>>, vector<96x16xbf16>
    tpu.vector_store %arg9[%c0_7, %c80_8], %6 {strides = array<i32>} : memref<96x96xbf16, #tpu.memory_space<vmem>>, vector<96x16xbf16>,
    %cst_9 = arith.constant 0.000000e+00 : bf16
    %8 = vector.broadcast %cst_9 : bf16 to vector<16x80xbf16>
    %c0_10 = arith.constant 0 : index
    %c0_11 = arith.constant 0 : index
    %9 = vector.load %arg11[%c0_10, %c0_11] : memref<160x80xbf16, #tpu.memory_space<vmem>>, vector<16x80xbf16>
    tpu.vector_store %arg11[%c0_10, %c0_11], %8 {strides = array<i32>} : memref<160x80xbf16, #tpu.memory_space<vmem>>, vector<16x80xbf16>,
    %cst_12 = arith.constant 0.000000e+00 : bf16
    %10 = vector.broadcast %cst_12 : bf16 to vector<16x80xbf16>
    %c144 = arith.constant 144 : index
    %c0_13 = arith.constant 0 : index
    %11 = vector.load %arg11[%c144, %c0_13] : memref<160x80xbf16, #tpu.memory_space<vmem>>, vector<16x80xbf16>
    tpu.vector_store %arg11[%c144, %c0_13], %10 {strides = array<i32>} : memref<160x80xbf16, #tpu.memory_space<vmem>>, vector<16x80xbf16>,
    %cst_14 = arith.constant 0.000000e+00 : bf16
    %12 = vector.broadcast %cst_14 : bf16 to vector<160x8xbf16>
    %c0_15 = arith.constant 0 : index
    %c0_16 = arith.constant 0 : index
    %13 = vector.load %arg11[%c0_15, %c0_16] : memref<160x80xbf16, #tpu.memory_space<vmem>>, vector<160x8xbf16>
    tpu.vector_store %arg11[%c0_15, %c0_16], %12 {strides = array<i32>} : memref<160x80xbf16, #tpu.memory_space<vmem>>, vector<160x8xbf16>,
    %cst_17 = arith.constant 0.000000e+00 : bf16
    %14 = vector.broadcast %cst_17 : bf16 to vector<160x8xbf16>
    %c0_18 = arith.constant 0 : index
    %c72 = arith.constant 72 : index
    %15 = vector.load %arg11[%c0_18, %c72] : memref<160x80xbf16, #tpu.memory_space<vmem>>, vector<160x8xbf16>
    tpu.vector_store %arg11[%c0_18, %c72], %14 {strides = array<i32>} : memref<160x80xbf16, #tpu.memory_space<vmem>>, vector<160x8xbf16>,
    %c0_19 = arith.constant 0 : index
    %c0_20 = arith.constant 0 : index
    %16 = vector.load %arg1[%c0_19, %c0_20] : memref<16x32xf32, #tpu.memory_space<vmem>>, vector<16x32xf32>
    %17 = arith.truncf %16 : vector<16x32xf32> to vector<16x32xbf16>
    %c0_21 = arith.constant 0 : index
    %c0_22 = arith.constant 0 : index
    %18 = vector.load %arg2[%c0_21, %c0_22] : memref<32x256xbf16, #tpu.memory_space<vmem>>, vector<32x256xbf16>
    %cst_23 = arith.constant dense<0.000000e+00> : vector<16x256xf32>
    %19 = tpu.matmul %17, %18, %cst_23 {dimension_numbers = #tpu.dot_dimension_numbers<[1], [0], [0], [1], [0, 0, 1, 1], [], []>} : vector<16x32xbf16>, vector<32x256xbf16>, vector<16x256xf32> -> vector<16x256xf32>
    %c0_24 = arith.constant 0 : index
    %c0_25 = arith.constant 0 : index
    %20 = vector.load %arg3[%c0_24, %c0_25] : memref<1x256xf32, #tpu.memory_space<vmem>>, vector<1x256xf32>
    %21 = vector.broadcast %20 : vector<1x256xf32> to vector<16x256xf32>
    %22 = arith.addf %19, %21 : vector<16x256xf32>
    %cst_26 = arith.constant 0.000000e+00 : f32
    %23 = vector.broadcast %cst_26 : f32 to vector<16x256xf32>
    %24 = arith.maximumf %22, %23 : vector<16x256xf32>
    %25 = arith.truncf %24 : vector<16x256xf32> to vector<16x256xbf16>
    %26 = vector.extract_strided_slice %25 {offsets = [0, 0], sizes = [16, 64], strides = [1, 1]} : vector<16x256xbf16> to vector<16x64xbf16>
    %c16 = arith.constant 16 : index
    %c16_27 = arith.constant 16 : index
    %27 = vector.load %arg9[%c16, %c16_27] : memref<96x96xbf16, #tpu.memory_space<vmem>>, vector<16x64xbf16>
    tpu.vector_store %arg9[%c16, %c16_27], %26 {strides = array<i32>} : memref<96x96xbf16, #tpu.memory_space<vmem>>, vector<16x64xbf16>,
    %28 = vector.extract_strided_slice %25 {offsets = [0, 64], sizes = [16, 64], strides = [1, 1]} : vector<16x256xbf16> to vector<16x64xbf16>
    %c32 = arith.constant 32 : index
    %c16_28 = arith.constant 16 : index
    %29 = vector.load %arg9[%c32, %c16_28] : memref<96x96xbf16, #tpu.memory_space<vmem>>, vector<16x64xbf16>
    tpu.vector_store %arg9[%c32, %c16_28], %28 {strides = array<i32>} : memref<96x96xbf16, #tpu.memory_space<vmem>>, vector<16x64xbf16>,
    %30 = vector.extract_strided_slice %25 {offsets = [0, 128], sizes = [16, 64], strides = [1, 1]} : vector<16x256xbf16> to vector<16x64xbf16>
    %c48 = arith.constant 48 : index
    %c16_29 = arith.constant 16 : index
    %31 = vector.load %arg9[%c48, %c16_29] : memref<96x96xbf16, #tpu.memory_space<vmem>>, vector<16x64xbf16>
    tpu.vector_store %arg9[%c48, %c16_29], %30 {strides = array<i32>} : memref<96x96xbf16, #tpu.memory_space<vmem>>, vector<16x64xbf16>,
    %32 = vector.extract_strided_slice %25 {offsets = [0, 192], sizes = [16, 64], strides = [1, 1]} : vector<16x256xbf16> to vector<16x64xbf16>
    %c64 = arith.constant 64 : index
    %c16_30 = arith.constant 16 : index
    %33 = vector.load %arg9[%c64, %c16_30] : memref<96x96xbf16, #tpu.memory_space<vmem>>, vector<16x64xbf16>
    tpu.vector_store %arg9[%c64, %c16_30], %32 {strides = array<i32>} : memref<96x96xbf16, #tpu.memory_space<vmem>>, vector<16x64xbf16>,
    %c0_31 = arith.constant 0 : index
    %c0_32 = arith.constant 0 : index
    %34 = vector.load %arg9[%c0_31, %c0_32] : memref<96x96xbf16, #tpu.memory_space<vmem>>, vector<64x96xbf16>
    %c0_33 = arith.constant 0 : index
    %c0_34 = arith.constant 0 : index
    %35 = vector.load %arg10[%c0_33, %c0_34] : memref<64x288xbf16, #tpu.memory_space<vmem>>, vector<64x96xbf16>
    tpu.vector_store %arg10[%c0_33, %c0_34], %34 {strides = array<i32>} : memref<64x288xbf16, #tpu.memory_space<vmem>>, vector<64x96xbf16>,
    %c16_35 = arith.constant 16 : index
    %c0_36 = arith.constant 0 : index
    %36 = vector.load %arg9[%c16_35, %c0_36] : memref<96x96xbf16, #tpu.memory_space<vmem>>, vector<64x96xbf16>
    %c0_37 = arith.constant 0 : index
    %c96 = arith.constant 96 : index
    %37 = vector.load %arg10[%c0_37, %c96] : memref<64x288xbf16, #tpu.memory_space<vmem>>, vector<64x96xbf16>
    tpu.vector_store %arg10[%c0_37, %c96], %36 {strides = array<i32>} : memref<64x288xbf16, #tpu.memory_space<vmem>>, vector<64x96xbf16>,
    %c32_38 = arith.constant 32 : index
    %c0_39 = arith.constant 0 : index
    %38 = vector.load %arg9[%c32_38, %c0_39] : memref<96x96xbf16, #tpu.memory_space<vmem>>, vector<64x96xbf16>
    %c0_40 = arith.constant 0 : index
    %c192 = arith.constant 192 : index
    %39 = vector.load %arg10[%c0_40, %c192] : memref<64x288xbf16, #tpu.memory_space<vmem>>, vector<64x96xbf16>
    tpu.vector_store %arg10[%c0_40, %c192], %38 {strides = array<i32>} : memref<64x288xbf16, #tpu.memory_space<vmem>>, vector<64x96xbf16>,
    %c0_41 = arith.constant 0 : index
    %c0_42 = arith.constant 0 : index
    %40 = vector.load %arg10[%c0_41, %c0_42] : memref<64x288xbf16, #tpu.memory_space<vmem>>, vector<64x288xbf16>
    %c0_43 = arith.constant 0 : index
    %c0_44 = arith.constant 0 : index
    %41 = vector.load %arg4[%c0_43, %c0_44] : memref<288x128xbf16, #tpu.memory_space<vmem>>, vector<288x128xbf16>
    %cst_45 = arith.constant dense<0.000000e+00> : vector<64x128xf32>
    %42 = tpu.matmul %40, %41, %cst_45 {dimension_numbers = #tpu.dot_dimension_numbers<[1], [0], [0], [1], [0, 0, 1, 1], [], []>} : vector<64x288xbf16>, vector<288x128xbf16>, vector<64x128xf32> -> vector<64x128xf32>
    %c0_46 = arith.constant 0 : index
    %c0_47 = arith.constant 0 : index
    %43 = vector.load %arg5[%c0_46, %c0_47] : memref<1x128xf32, #tpu.memory_space<vmem>>, vector<1x128xf32>
    %44 = vector.broadcast %43 : vector<1x128xf32> to vector<64x128xf32>
    %45 = arith.addf %42, %44 : vector<64x128xf32>
    %cst_48 = arith.constant 0.000000e+00 : f32
    %46 = vector.broadcast %cst_48 : f32 to vector<64x128xf32>
    %47 = arith.maximumf %45, %46 : vector<64x128xf32>
    %48 = arith.truncf %47 : vector<64x128xf32> to vector<64x128xbf16>
    %49 = vector.extract_strided_slice %48 {offsets = [0, 0], sizes = [16, 64], strides = [1, 1]} : vector<64x128xbf16> to vector<16x64xbf16>
    %c16_49 = arith.constant 16 : index
    %c8 = arith.constant 8 : index
    %50 = vector.load %arg11[%c16_49, %c8] : memref<160x80xbf16, #tpu.memory_space<vmem>>, vector<16x64xbf16>
    tpu.vector_store %arg11[%c16_49, %c8], %49 {strides = array<i32>} : memref<160x80xbf16, #tpu.memory_space<vmem>>, vector<16x64xbf16>,
    %51 = vector.extract_strided_slice %48 {offsets = [0, 64], sizes = [16, 64], strides = [1, 1]} : vector<64x128xbf16> to vector<16x64xbf16>
    %c32_50 = arith.constant 32 : index
    %c8_51 = arith.constant 8 : index
    %52 = vector.load %arg11[%c32_50, %c8_51] : memref<160x80xbf16, #tpu.memory_space<vmem>>, vector<16x64xbf16>
    tpu.vector_store %arg11[%c32_50, %c8_51], %51 {strides = array<i32>} : memref<160x80xbf16, #tpu.memory_space<vmem>>, vector<16x64xbf16>,
    %53 = vector.extract_strided_slice %48 {offsets = [16, 0], sizes = [16, 64], strides = [1, 1]} : vector<64x128xbf16> to vector<16x64xbf16>
    %c48_52 = arith.constant 48 : index
    %c8_53 = arith.constant 8 : index
    %54 = vector.load %arg11[%c48_52, %c8_53] : memref<160x80xbf16, #tpu.memory_space<vmem>>, vector<16x64xbf16>
    tpu.vector_store %arg11[%c48_52, %c8_53], %53 {strides = array<i32>} : memref<160x80xbf16, #tpu.memory_space<vmem>>, vector<16x64xbf16>,
    %55 = vector.extract_strided_slice %48 {offsets = [16, 64], sizes = [16, 64], strides = [1, 1]} : vector<64x128xbf16> to vector<16x64xbf16>
    %c64_54 = arith.constant 64 : index
    %c8_55 = arith.constant 8 : index
    %56 = vector.load %arg11[%c64_54, %c8_55] : memref<160x80xbf16, #tpu.memory_space<vmem>>, vector<16x64xbf16>
    tpu.vector_store %arg11[%c64_54, %c8_55], %55 {strides = array<i32>} : memref<160x80xbf16, #tpu.memory_space<vmem>>, vector<16x64xbf16>,
    %57 = vector.extract_strided_slice %48 {offsets = [32, 0], sizes = [16, 64], strides = [1, 1]} : vector<64x128xbf16> to vector<16x64xbf16>
    %c80_56 = arith.constant 80 : index
    %c8_57 = arith.constant 8 : index
    %58 = vector.load %arg11[%c80_56, %c8_57] : memref<160x80xbf16, #tpu.memory_space<vmem>>, vector<16x64xbf16>
    tpu.vector_store %arg11[%c80_56, %c8_57], %57 {strides = array<i32>} : memref<160x80xbf16, #tpu.memory_space<vmem>>, vector<16x64xbf16>,
    %59 = vector.extract_strided_slice %48 {offsets = [32, 64], sizes = [16, 64], strides = [1, 1]} : vector<64x128xbf16> to vector<16x64xbf16>
    %c96_58 = arith.constant 96 : index
    %c8_59 = arith.constant 8 : index
    %60 = vector.load %arg11[%c96_58, %c8_59] : memref<160x80xbf16, #tpu.memory_space<vmem>>, vector<16x64xbf16>
    tpu.vector_store %arg11[%c96_58, %c8_59], %59 {strides = array<i32>} : memref<160x80xbf16, #tpu.memory_space<vmem>>, vector<16x64xbf16>,
    %61 = vector.extract_strided_slice %48 {offsets = [48, 0], sizes = [16, 64], strides = [1, 1]} : vector<64x128xbf16> to vector<16x64xbf16>
    %c112 = arith.constant 112 : index
    %c8_60 = arith.constant 8 : index
    %62 = vector.load %arg11[%c112, %c8_60] : memref<160x80xbf16, #tpu.memory_space<vmem>>, vector<16x64xbf16>
    tpu.vector_store %arg11[%c112, %c8_60], %61 {strides = array<i32>} : memref<160x80xbf16, #tpu.memory_space<vmem>>, vector<16x64xbf16>,
    %63 = vector.extract_strided_slice %48 {offsets = [48, 64], sizes = [16, 64], strides = [1, 1]} : vector<64x128xbf16> to vector<16x64xbf16>
    %c128 = arith.constant 128 : index
    %c8_61 = arith.constant 8 : index
    %64 = vector.load %arg11[%c128, %c8_61] : memref<160x80xbf16, #tpu.memory_space<vmem>>, vector<16x64xbf16>
    tpu.vector_store %arg11[%c128, %c8_61], %63 {strides = array<i32>} : memref<160x80xbf16, #tpu.memory_space<vmem>>, vector<16x64xbf16>,
    %c0_62 = arith.constant 0 : index
    %c0_63 = arith.constant 0 : index
    %65 = vector.load %arg11[%c0_62, %c0_63] : memref<160x80xbf16, #tpu.memory_space<vmem>>, vector<128x80xbf16>
    %c0_64 = arith.constant 0 : index
    %c0_65 = arith.constant 0 : index
    %66 = vector.load %arg12[%c0_64, %c0_65] : memref<128x240xbf16, #tpu.memory_space<vmem>>, vector<128x80xbf16>
    tpu.vector_store %arg12[%c0_64, %c0_65], %65 {strides = array<i32>} : memref<128x240xbf16, #tpu.memory_space<vmem>>, vector<128x80xbf16>,
    %c16_66 = arith.constant 16 : index
    %c0_67 = arith.constant 0 : index
    %67 = vector.load %arg11[%c16_66, %c0_67] : memref<160x80xbf16, #tpu.memory_space<vmem>>, vector<128x80xbf16>
    %c0_68 = arith.constant 0 : index
    %c80_69 = arith.constant 80 : index
    %68 = vector.load %arg12[%c0_68, %c80_69] : memref<128x240xbf16, #tpu.memory_space<vmem>>, vector<128x80xbf16>
    tpu.vector_store %arg12[%c0_68, %c80_69], %67 {strides = array<i32>} : memref<128x240xbf16, #tpu.memory_space<vmem>>, vector<128x80xbf16>,
    %c32_70 = arith.constant 32 : index
    %c0_71 = arith.constant 0 : index
    %69 = vector.load %arg11[%c32_70, %c0_71] : memref<160x80xbf16, #tpu.memory_space<vmem>>, vector<128x80xbf16>
    %c0_72 = arith.constant 0 : index
    %c160 = arith.constant 160 : index
    %70 = vector.load %arg12[%c0_72, %c160] : memref<128x240xbf16, #tpu.memory_space<vmem>>, vector<128x80xbf16>
    tpu.vector_store %arg12[%c0_72, %c160], %69 {strides = array<i32>} : memref<128x240xbf16, #tpu.memory_space<vmem>>, vector<128x80xbf16>,
    %c0_73 = arith.constant 0 : index
    %c0_74 = arith.constant 0 : index
    %71 = vector.load %arg12[%c0_73, %c0_74] : memref<128x240xbf16, #tpu.memory_space<vmem>>, vector<128x240xbf16>
    %c0_75 = arith.constant 0 : index
    %c0_76 = arith.constant 0 : index
    %72 = vector.load %arg6[%c0_75, %c0_76] : memref<240x128xbf16, #tpu.memory_space<vmem>>, vector<240x128xbf16>
    %cst_77 = arith.constant dense<0.000000e+00> : vector<128x128xf32>
    %73 = tpu.matmul %71, %72, %cst_77 {dimension_numbers = #tpu.dot_dimension_numbers<[1], [0], [0], [1], [0, 0, 1, 1], [], []>} : vector<128x240xbf16>, vector<240x128xbf16>, vector<128x128xf32> -> vector<128x128xf32>
    %c0_78 = arith.constant 0 : index
    %c0_79 = arith.constant 0 : index
    %74 = vector.load %arg7[%c0_78, %c0_79] : memref<1x128xf32, #tpu.memory_space<vmem>>, vector<1x128xf32>
    %75 = vector.broadcast %74 : vector<1x128xf32> to vector<128x128xf32>
    %76 = arith.addf %73, %75 : vector<128x128xf32>
    %cst_80 = arith.constant 0.000000e+00 : f32
    %77 = vector.broadcast %cst_80 : f32 to vector<128x128xf32>
    %78 = arith.subf %77, %76 : vector<128x128xf32>
    %79 = math.exp %78 : vector<128x128xf32>
    %cst_81 = arith.constant 1.000000e+00 : f32
    %80 = vector.broadcast %cst_81 : f32 to vector<128x128xf32>
    %81 = arith.addf %80, %79 : vector<128x128xf32>
    %82 = tpu.reciprocal %81 : vector<128x128xf32> -> vector<128x128xf32>
    %cst_82 = arith.constant 0.000000e+00 : f32
    %83 = vector.broadcast %cst_82 : f32 to vector<128x128xf32>
    %84 = arith.subf %83, %82 : vector<128x128xf32>
    %85 = math.exp %84 : vector<128x128xf32>
    %cst_83 = arith.constant 1.000000e+00 : f32
    %86 = vector.broadcast %cst_83 : f32 to vector<128x128xf32>
    %87 = arith.addf %86, %85 : vector<128x128xf32>
    %88 = tpu.reciprocal %87 {approx = true} : vector<128x128xf32> -> vector<128x128xf32>
    %c0_84 = arith.constant 0 : index
    %c0_85 = arith.constant 0 : index
    %c0_86 = arith.constant 0 : index
    %89 = vector.load %arg8[%c0_84, %c0_85, %c0_86] : memref<1x128x128xf32, #tpu.memory_space<vmem>>, vector<1x128x128xf32>
    %90 = vector.shape_cast %89 : vector<1x128x128xf32> to vector<128x128xf32>
    %91 = vector.shape_cast %88 : vector<128x128xf32> to vector<1x128x128xf32>
    tpu.vector_store %arg8[%c0_84, %c0_85, %c0_86], %91 {strides = array<i32>} : memref<1x128x128xf32, #tpu.memory_space<vmem>>, vector<1x128x128xf32>,
    return
  }
  func.func @transform_0(%arg0: i32) -> (i32, i32) {
    %c0_i32 = arith.constant 0 : i32
    %c0_i32_0 = arith.constant 0 : i32
    return %arg0, %c0_i32 : i32, i32
  }
  func.func @transform_1(%arg0: i32) -> (i32, i32) {
    %c0_i32 = arith.constant 0 : i32
    %c0_i32_0 = arith.constant 0 : i32
    %c0_i32_1 = arith.constant 0 : i32
    return %c0_i32, %c0_i32_0 : i32, i32
  }
  func.func @transform_2(%arg0: i32) -> (i32, i32) {
    %c0_i32 = arith.constant 0 : i32
    %c0_i32_0 = arith.constant 0 : i32
    %c0_i32_1 = arith.constant 0 : i32
    return %c0_i32, %c0_i32_0 : i32, i32
  }
  func.func @transform_3(%arg0: i32) -> (i32, i32) {
    %c0_i32 = arith.constant 0 : i32
    %c0_i32_0 = arith.constant 0 : i32
    %c0_i32_1 = arith.constant 0 : i32
    return %c0_i32, %c0_i32_0 : i32, i32
  }
  func.func @transform_4(%arg0: i32) -> (i32, i32) {
    %c0_i32 = arith.constant 0 : i32
    %c0_i32_0 = arith.constant 0 : i32
    %c0_i32_1 = arith.constant 0 : i32
    return %c0_i32, %c0_i32_0 : i32, i32
  }
  func.func @transform_5(%arg0: i32) -> (i32, i32) {
    %c0_i32 = arith.constant 0 : i32
    %c0_i32_0 = arith.constant 0 : i32
    %c0_i32_1 = arith.constant 0 : i32
    return %c0_i32, %c0_i32_0 : i32, i32
  }
  func.func @transform_6(%arg0: i32) -> (i32, i32) {
    %c0_i32 = arith.constant 0 : i32
    %c0_i32_0 = arith.constant 0 : i32
    %c0_i32_1 = arith.constant 0 : i32
    return %c0_i32, %c0_i32_0 : i32, i32
  }
  func.func @transform_7(%arg0: i32) -> (i32, i32, i32) {
    %c0_i32 = arith.constant 0 : i32
    %c0_i32_0 = arith.constant 0 : i32
    %c0_i32_1 = arith.constant 0 : i32
    return %arg0, %c0_i32, %c0_i32_0 : i32, i32, i32
  }
}

</mosaic_0001>

<llo_original>
// kernel: tpu_custom_call.1
$region0: #{tpu_custom_call.1}
  #allocation0 [shape = 'u32[]', space=smem, size = 0x4, offset = 0x4, fixed_abs, tag = 'smem constant byte address 0x4 - core index']
  #allocation1 [shape = 'u32[144,128]{1,0:T(1,128)}', space=vmem, size = 0x12000, scoped, tag = 'internal scratch']
  #allocation2 [shape = 'bf16[96,96]{1,0:T(8,128)(2,1)}', space=vmem, size = 0x6000, scoped, tag = 'scratch operand']
  #allocation3 [shape = 'bf16[64,288]{1,0:T(8,128)(2,1)}', space=vmem, size = 0xc000, scoped, tag = 'scratch operand']
  #allocation4 [shape = 'bf16[160,80]{1,0:T(8,128)(2,1)}', space=vmem, size = 0xa000, scoped, tag = 'scratch operand']
  #allocation5 [shape = 'bf16[128,240]{1,0:T(8,128)(2,1)}', space=vmem, size = 0x10000, scoped, tag = 'scratch operand']
  %s0 = inlined_call_operand.hbm [shape: f32[16,32], index: 0, kind: input, shape index: {}]
  %s1 = inlined_call_operand.hbm [shape: bf16[32,256], index: 1, kind: input, shape index: {}]
  %s2 = inlined_call_operand.vmem [shape: f32[1,256], index: 2, kind: input, shape index: {}]
  %s3 = inlined_call_operand.hbm [shape: bf16[288,128], index: 3, kind: input, shape index: {}]
  %s4 = inlined_call_operand.vmem [shape: f32[1,128], index: 4, kind: input, shape index: {}]
  %s5 = inlined_call_operand.hbm [shape: bf16[240,128], index: 5, kind: input, shape index: {}]
  %s6 = inlined_call_operand.vmem [shape: f32[1,128], index: 6, kind: input, shape index: {}]
  %s7 = inlined_call_operand.hbm [shape: f32[1,128,128], index: 7, kind: output, shape index: {}]
  %s8 = sld [smem:[#allocation0]]
  $region54: #{tpu_custom_call.1} parent=0
    _
  %s10 = ssub.s32 1, %s8
  %s11 = scalar_select 0, %s10, %s8
  $region1: #{tpu_custom_call.1} parent=0
    #allocation6 [shape = 'u8[8192]{0}', space=vmem, size = 0x2000, scoped, tag = 'input window, operand 0, single buffered']
    #allocation7 [shape = 's32[1]{0}', space=sflag, size = 0x4, scoped, tag = 'scoped memory for tpu_custom_call.1']
    #allocation8 [shape = 's32[1]{0}', space=sflag, size = 0x4, scoped, tag = 'scoped memory for tpu_custom_call.1']
    #allocation9 [shape = 'u8[16384]{0}', space=vmem, size = 0x4000, scoped, tag = 'input window, operand 1, single buffered']
    #allocation10 [shape = 's32[1]{0}', space=sflag, size = 0x4, scoped, tag = 'scoped memory for tpu_custom_call.1']
    #allocation11 [shape = 'u8[73728]{0}', space=vmem, size = 0x12000, scoped, tag = 'input window, operand 3, single buffered']
    #allocation12 [shape = 'u8[61440]{0}', space=vmem, size = 0xf000, scoped, tag = 'input window, operand 5, single buffered']
    #allocation13 [shape = 's32[1]{0}', space=sflag, size = 0x4, scoped, tag = 'scoped memory for tpu_custom_call.1']
    #allocation14 [shape = 'u8[65536]{0}', space=vmem, size = 0x10000, scoped, tag = 'output window, operand 0, single buffered']
    %12 = vsyncpa [#allocation7], 0
    %13 = vsyncpa [#allocation10], 0
    %14 = vsyncpa [#allocation13], 0
    %15 = vsyncpa [#allocation8], 0
    // Predicated region
    $region2: #{tpu_custom_call.1} parent=1 // pred_check
      _
    $region3: #{tpu_custom_call.1} parent=1 // pred_check_branch
      %17 = sbr.rel (0) target = $region5
    $region4: #{tpu_custom_call.1} parent=1 // pred_region
      %s19 = ssub.s32 256, 256
      %20 = vsyncadd [#allocation7], %s19
      %s21 = sshll.u32 [#allocation6], 4
      %s22 = int_to_ptr.vmem [resolvable:$true] %s21
      %27 = dma.hbm_to_vmem [thread:$0]  %s0, 256, %s22, [#allocation7], 128, 128, 8
    $region5: #{tpu_custom_call.1} parent=1 // pred_fallthru
      _
    // Predicated region
    $region6: #{tpu_custom_call.1} parent=1 // pred_check
      _
    $region7: #{tpu_custom_call.1} parent=1 // pred_check_branch
      %29 = sbr.rel (0) target = $region9
    $region8: #{tpu_custom_call.1} parent=1 // pred_region
      %s31 = ssub.s32 512, 512
      %32 = vsyncadd [#allocation10], %s31
      %s33 = sshll.u32 [#allocation9], 4
      %s34 = int_to_ptr.vmem [resolvable:$true] %s33
      %39 = dma.hbm_to_vmem [thread:$0]  %s1, 512, %s34, [#allocation10], 128, 128, 8
    $region9: #{tpu_custom_call.1} parent=1 // pred_fallthru
      _
    // Predicated region
    $region10: #{tpu_custom_call.1} parent=1 // pred_check
      _
    $region11: #{tpu_custom_call.1} parent=1 // pred_check_branch
      %41 = sbr.rel (0) target = $region13
    $region12: #{tpu_custom_call.1} parent=1 // pred_region
      _
    $region13: #{tpu_custom_call.1} parent=1 // pred_fallthru
      _
    // Predicated region
    $region14: #{tpu_custom_call.1} parent=1 // pred_check
      _
    $region15: #{tpu_custom_call.1} parent=1 // pred_check_branch
      %43 = sbr.rel (0) target = $region17
    $region16: #{tpu_custom_call.1} parent=1 // pred_region
      %s45 = ssub.s32 2304, 2304
      %46 = vsyncadd [#allocation10], %s45
      %s47 = sshll.u32 [#allocation11], 4
      %s48 = int_to_ptr.vmem [resolvable:$true] %s47
      %53 = dma.hbm_to_vmem [thread:$0]  %s3, 2304, %s48, [#allocation10], 64, 64, 4
    $region17: #{tpu_custom_call.1} parent=1 // pred_fallthru
      _
    // Predicated region
    $region18: #{tpu_custom_call.1} parent=1 // pred_check
      _
    $region19: #{tpu_custom_call.1} parent=1 // pred_check_branch
      %55 = sbr.rel (0) target = $region21
    $region20: #{tpu_custom_call.1} parent=1 // pred_region
      _
    $region21: #{tpu_custom_call.1} parent=1 // pred_fallthru
      _
    // Predicated region
    $region22: #{tpu_custom_call.1} parent=1 // pred_check
      _
    $region23: #{tpu_custom_call.1} parent=1 // pred_check_branch
      %57 = sbr.rel (0) target = $region25
    $region24: #{tpu_custom_call.1} parent=1 // pred_region
      %s59 = ssub.s32 1920, 1920
      %60 = vsyncadd [#allocation13], %s59
      %s61 = sshll.u32 [#allocation12], 4
      %s62 = int_to_ptr.vmem [resolvable:$true] %s61
      %67 = dma.hbm_to_vmem [thread:$0]  %s5, 1920, %s62, [#allocation13], 64, 64, 4
    $region25: #{tpu_custom_call.1} parent=1 // pred_fallthru
      _
    // Predicated region
    $region26: #{tpu_custom_call.1} parent=1 // pred_check
      _
    $region27: #{tpu_custom_call.1} parent=1 // pred_check_branch
      %69 = sbr.rel (0) target = $region29
    $region28: #{tpu_custom_call.1} parent=1 // pred_region
      _
    $region29: #{tpu_custom_call.1} parent=1 // pred_fallthru
      _
    // Predicated region
    $region30: #{tpu_custom_call.1} parent=1 // pred_check
      _
    $region31: #{tpu_custom_call.1} parent=1 // pred_check_branch
      %71 = sbr.rel (0) target = $region33
    $region32: #{tpu_custom_call.1} parent=1 // pred_region
      %72 = dma.done [#allocation7], 256
    $region33: #{tpu_custom_call.1} parent=1 // pred_fallthru
      _
    // Predicated region
    $region34: #{tpu_custom_call.1} parent=1 // pred_check
      _
    $region35: #{tpu_custom_call.1} parent=1 // pred_check_branch
      %74 = sbr.rel (0) target = $region37
    $region36: #{tpu_custom_call.1} parent=1 // pred_region
      %75 = dma.done [#allocation10], 512
    $region37: #{tpu_custom_call.1} parent=1 // pred_fallthru
      _
    // Predicated region
    $region38: #{tpu_custom_call.1} parent=1 // pred_check
      _
    $region39: #{tpu_custom_call.1} parent=1 // pred_check_branch
      %77 = sbr.rel (0) target = $region41
    $region40: #{tpu_custom_call.1} parent=1 // pred_region
      %78 = dma.done [#allocation10], 2304
    $region41: #{tpu_custom_call.1} parent=1 // pred_fallthru
      _
    // Predicated region
    $region42: #{tpu_custom_call.1} parent=1 // pred_check
      _
    $region43: #{tpu_custom_call.1} parent=1 // pred_check_branch
      %80 = sbr.rel (0) target = $region45
    $region44: #{tpu_custom_call.1} parent=1 // pred_region
      %81 = dma.done [#allocation13], 1920
    $region45: #{tpu_custom_call.1} parent=1 // pred_fallthru
      _
    %vm83 = vcmask 781312
    %84 = vst.msk [vmem:[#allocation2] sm:$0xf] %vm83, 0
    %85 = vst.msk [vmem:[#allocation2 + $0x4] sm:$0xf] %vm83, 0
    %86 = vst.msk [vmem:[#allocation2 + $0x28] sm:$0xf] %vm83, 0
    %87 = vst.msk [vmem:[#allocation2 + $0x2c] sm:$0xf] %vm83, 0
    %vm88 = vcmask 125952
    %89 = vst.msk [vmem:[#allocation2] sm:$0xf] %vm88, 0
    %90 = vst.msk [vmem:[#allocation2 + $0x4] sm:$0xf] %vm88, 0
    %91 = vst.msk [vmem:[#allocation2 + $0x8] sm:$0xf] %vm88, 0
    %92 = vst.msk [vmem:[#allocation2 + $0xc] sm:$0xf] %vm88, 0
    %93 = vst.msk [vmem:[#allocation2 + $0x10] sm:$0xf] %vm88, 0
    %94 = vst.msk [vmem:[#allocation2 + $0x14] sm:$0xf] %vm88, 0
    %95 = vst.msk [vmem:[#allocation2 + $0x18] sm:$0xf] %vm88, 0
    %96 = vst.msk [vmem:[#allocation2 + $0x1c] sm:$0xf] %vm88, 0
    %97 = vst.msk [vmem:[#allocation2 + $0x20] sm:$0xf] %vm88, 0
    %98 = vst.msk [vmem:[#allocation2 + $0x24] sm:$0xf] %vm88, 0
    %99 = vst.msk [vmem:[#allocation2 + $0x28] sm:$0xf] %vm88, 0
    %100 = vst.msk [vmem:[#allocation2 + $0x2c] sm:$0xf] %vm88, 0
    %vm101 = vcmask 781952
    %102 = vst.msk [vmem:[#allocation2] sm:$0xf] %vm101, 0
    %103 = vst.msk [vmem:[#allocation2 + $0x4] sm:$0xf] %vm101, 0
    %104 = vst.msk [vmem:[#allocation2 + $0x8] sm:$0xf] %vm101, 0
    %105 = vst.msk [vmem:[#allocation2 + $0xc] sm:$0xf] %vm101, 0
    %106 = vst.msk [vmem:[#allocation2 + $0x10] sm:$0xf] %vm101, 0
    %107 = vst.msk [vmem:[#allocation2 + $0x14] sm:$0xf] %vm101, 0
    %108 = vst.msk [vmem:[#allocation2 + $0x18] sm:$0xf] %vm101, 0
    %109 = vst.msk [vmem:[#allocation2 + $0x1c] sm:$0xf] %vm101, 0
    %110 = vst.msk [vmem:[#allocation2 + $0x20] sm:$0xf] %vm101, 0
    %111 = vst.msk [vmem:[#allocation2 + $0x24] sm:$0xf] %vm101, 0
    %112 = vst.msk [vmem:[#allocation2 + $0x28] sm:$0xf] %vm101, 0
    %113 = vst.msk [vmem:[#allocation2 + $0x2c] sm:$0xf] %vm101, 0
    %vm114 = vcmask 650240
    %115 = vst.msk [vmem:[#allocation4] sm:$0xf] %vm114, 0
    %116 = vst.msk [vmem:[#allocation4 + $0x4] sm:$0xf] %vm114, 0
    %117 = vst.msk [vmem:[#allocation4 + $0x48] sm:$0xf] %vm114, 0
    %118 = vst.msk [vmem:[#allocation4 + $0x4c] sm:$0xf] %vm114, 0
    %vm119 = vcmask 60416
    %120 = vst.msk [vmem:[#allocation4] sm:$0xf] %vm119, 0
    %121 = vst.msk [vmem:[#allocation4 + $0x4] sm:$0xf] %vm119, 0
    %122 = vst.msk [vmem:[#allocation4 + $0x8] sm:$0xf] %vm119, 0
    %123 = vst.msk [vmem:[#allocation4 + $0xc] sm:$0xf] %vm119, 0
    %124 = vst.msk [vmem:[#allocation4 + $0x10] sm:$0xf] %vm119, 0
    %125 = vst.msk [vmem:[#allocation4 + $0x14] sm:$0xf] %vm119, 0
    %126 = vst.msk [vmem:[#allocation4 + $0x18] sm:$0xf] %vm119, 0
    %127 = vst.msk [vmem:[#allocation4 + $0x1c] sm:$0xf] %vm119, 0
    %128 = vst.msk [vmem:[#allocation4 + $0x20] sm:$0xf] %vm119, 0
    %129 = vst.msk [vmem:[#allocation4 + $0x24] sm:$0xf] %vm119, 0
    %130 = vst.msk [vmem:[#allocation4 + $0x28] sm:$0xf] %vm119, 0
    %131 = vst.msk [vmem:[#allocation4 + $0x2c] sm:$0xf] %vm119, 0
    %132 = vst.msk [vmem:[#allocation4 + $0x30] sm:$0xf] %vm119, 0
    %133 = vst.msk [vmem:[#allocation4 + $0x34] sm:$0xf] %vm119, 0
    %134 = vst.msk [vmem:[#allocation4 + $0x38] sm:$0xf] %vm119, 0
    %135 = vst.msk [vmem:[#allocation4 + $0x3c] sm:$0xf] %vm119, 0
    %136 = vst.msk [vmem:[#allocation4 + $0x40] sm:$0xf] %vm119, 0
    %137 = vst.msk [vmem:[#allocation4 + $0x44] sm:$0xf] %vm119, 0
    %138 = vst.msk [vmem:[#allocation4 + $0x48] sm:$0xf] %vm119, 0
    %139 = vst.msk [vmem:[#allocation4 + $0x4c] sm:$0xf] %vm119, 0
    %vm140 = vcmask 650816
    %141 = vst.msk [vmem:[#allocation4] sm:$0xf] %vm140, 0
    %142 = vst.msk [vmem:[#allocation4 + $0x4] sm:$0xf] %vm140, 0
    %143 = vst.msk [vmem:[#allocation4 + $0x8] sm:$0xf] %vm140, 0
    %144 = vst.msk [vmem:[#allocation4 + $0xc] sm:$0xf] %vm140, 0
    %145 = vst.msk [vmem:[#allocation4 + $0x10] sm:$0xf] %vm140, 0
    %146 = vst.msk [vmem:[#allocation4 + $0x14] sm:$0xf] %vm140, 0
    %147 = vst.msk [vmem:[#allocation4 + $0x18] sm:$0xf] %vm140, 0
    %148 = vst.msk [vmem:[#allocation4 + $0x1c] sm:$0xf] %vm140, 0
    %149 = vst.msk [vmem:[#allocation4 + $0x20] sm:$0xf] %vm140, 0
    %150 = vst.msk [vmem:[#allocation4 + $0x24] sm:$0xf] %vm140, 0
    %151 = vst.msk [vmem:[#allocation4 + $0x28] sm:$0xf] %vm140, 0
    %152 = vst.msk [vmem:[#allocation4 + $0x2c] sm:$0xf] %vm140, 0
    %153 = vst.msk [vmem:[#allocation4 + $0x30] sm:$0xf] %vm140, 0
    %154 = vst.msk [vmem:[#allocation4 + $0x34] sm:$0xf] %vm140, 0
    %155 = vst.msk [vmem:[#allocation4 + $0x38] sm:$0xf] %vm140, 0
    %156 = vst.msk [vmem:[#allocation4 + $0x3c] sm:$0xf] %vm140, 0
    %157 = vst.msk [vmem:[#allocation4 + $0x40] sm:$0xf] %vm140, 0
    %158 = vst.msk [vmem:[#allocation4 + $0x44] sm:$0xf] %vm140, 0
    %159 = vst.msk [vmem:[#allocation4 + $0x48] sm:$0xf] %vm140, 0
    %160 = vst.msk [vmem:[#allocation4 + $0x4c] sm:$0xf] %vm140, 0
    %v161 = vld [vmem:[#allocation6] sm:$0xff]
    %v162 = vld [vmem:[#allocation6 + $0x8] sm:$0xff]
    %v163 = vpack.c.bf16 %v162, %v161
    %v164 = vld [vmem:[#allocation9] sm:$0xff]
    %v165 = vld [vmem:[#allocation9 + $0x8] sm:$0xff]
    %v166 = vld [vmem:[#allocation9 + $0x10] sm:$0xff]
    %v167 = vld [vmem:[#allocation9 + $0x18] sm:$0xff]
    %v168 = vld [vmem:[%s2] sm:$0x3]
    %v170 = vlaneseq
    %v171 = vshrl.u32 %v170, 7
    %v172 = vsub.s32 0, %v171
    %v173 = vrot.slane %v168, %v172
    %v174 = vlaneseq
    %v175 = vshrl.u32 %v174, 7
    %v176 = vsub.s32 1, %v175
    %v177 = vrot.slane %v168, %v176
    %v184 = vunpack.c.l.b16 %v164
    %v185 = vunpack.c.h.b16 %v164
    %v186 = vunpack.c.l.b16 %v165
    %v187 = vunpack.c.h.b16 %v165
    %v188 = vunpack.c.l.b16 %v166
    %v189 = vunpack.c.h.b16 %v166
    %v190 = vunpack.c.l.b16 %v167
    %v191 = vunpack.c.h.b16 %v167
    %v192 = vpack.c.b16 %v186, %v184
    %v193 = vpack.c.b16 %v187, %v185
    %v194 = vpack.c.b16 %v190, %v188
    %v195 = vpack.c.b16 %v191, %v189
    %vm200 = vcmask 261120
    %v202 = vsel %vm200, %v163, 0
    %204 = vmatprep.subr.bf16.mxu0 0
    %205 = vmatpush1.bf16.msra.mxu0 0
    %206 = vmatprep.subr.bf16.mxu0 0
    %207 = vmatpush1.bf16.msra.mxu0 0
    %208 = vmatprep.subr.bf16.mxu0 0
    %209 = vmatpush1.bf16.msra.mxu0 0
    %210 = vmatprep.subr.bf16.mxu0 0
    %211 = vmatpush1.bf16.msra.mxu0 0
    %212 = vmatprep.subr.bf16.mxu0 0
    %213 = vmatpush1.bf16.msra.mxu0 0
    %214 = vmatprep.subr.bf16.mxu0 0
    %215 = vmatpush1.bf16.msra.mxu0 0
    %216 = vmatprep.subr.bf16.mxu0 %v195
    %217 = vmatpush1.bf16.msra.mxu0 %v194
    %218 = vmatprep.subr.bf16.mxu0 %v193
    %219 = vmatpush1.bf16.msra.mxu0 %v192
    %220 = vmatprep.subr.bf16.mxu0 0
    %221 = vmatpush2.bf16.msra.mxu0 0
    %222 = vmatprep.subr.bf16.mxu0 0
    %223 = vmatpush2.bf16.msra.mxu0 0
    %224 = vmatprep.subr.bf16.mxu0 0
    %225 = vmatpush2.bf16.msra.mxu0 0
    %226 = vmatprep.subr.bf16.mxu0 0
    %227 = vmatpush2.bf16.msra.mxu0 0
    %228 = vmatprep.subr.bf16.mxu0 0
    %229 = vmatpush2.bf16.msra.mxu0 0
    %230 = vmatprep.subr.bf16.mxu0 0
    %231 = vmatpush2.bf16.msra.mxu0 0
    %232 = vmatprep.subr.bf16.mxu0 0
    %233 = vmatpush2.bf16.msra.mxu0 0
    %234 = vmatprep.subr.bf16.mxu0 0
    %235 = vmatpush2.bf16.msra.mxu0 0
    %236 = vmatprep.mubr.bf16.mxu0 0
    %237 = vmatmul.mubr.bf16.gmra.mxu0 %v202
    %v238 = vpop.f32.mrf.mxu0
    %v239 = vadd.f32 %v173, %v238
    %v240 = vpop.f32.mrf.mxu0
    %v241 = vadd.f32 %v177, %v240
    %v242 = vpop.f32.mrf.mxu0
    %v243 = vadd.f32 %v173, %v242
    %v244 = vpop.f32.mrf.mxu0
    %v245 = vadd.f32 %v177, %v244
    %246 = vdwg.mxu0
    %v247 = vmax.f32 %v239, 0.0
    %v248 = vmax.f32 %v241, 0.0
    %v249 = vmax.f32 %v243, 0.0
    %v250 = vmax.f32 %v245, 0.0
    %v251 = vpack.c.bf16 %v249, %v247
    %v252 = vpack.c.bf16 %v250, %v248
    %v254 = vunpack.c.l.b16 %v251
    %v255 = vunpack.c.h.b16 %v251
    %v256 = vpack.c.b16 %v254, %v254
    %v257 = vpack.c.b16 %v255, %v255
    %258 = vrot.lane.b32.xlu0 %v256, 16
    %v259 = vpop.permute.xlu0 %258
    %260 = vrot.lane.b32.xlu0 %v257, 16
    %v261 = vpop.permute.xlu0 %260
    %vm264 = vcmask 650368
    %265 = vst.msk [vmem:[#allocation2 + $0x8] sm:$0xf] %vm264, %v259
    %266 = vst.msk [vmem:[#allocation2 + $0xc] sm:$0xf] %vm264, %v261
    %267 = vrot.lane.b32.xlu0 %v256, 80
    %v268 = vpop.permute.xlu0 %267
    %269 = vrot.lane.b32.xlu0 %v257, 80
    %v270 = vpop.permute.xlu0 %269
    %273 = vst.msk [vmem:[#allocation2 + $0x10] sm:$0xf] %vm264, %v268
    %274 = vst.msk [vmem:[#allocation2 + $0x14] sm:$0xf] %vm264, %v270
    %v276 = vunpack.c.l.b16 %v252
    %v277 = vunpack.c.h.b16 %v252
    %v278 = vpack.c.b16 %v276, %v276
    %v279 = vpack.c.b16 %v277, %v277
    %280 = vrot.lane.b32.xlu0 %v278, 16
    %v281 = vpop.permute.xlu0 %280
    %282 = vrot.lane.b32.xlu0 %v279, 16
    %v283 = vpop.permute.xlu0 %282
    %286 = vst.msk [vmem:[#allocation2 + $0x18] sm:$0xf] %vm264, %v281
    %287 = vst.msk [vmem:[#allocation2 + $0x1c] sm:$0xf] %vm264, %v283
    %288 = vrot.lane.b32.xlu0 %v278, 80
    %v289 = vpop.permute.xlu0 %288
    %290 = vrot.lane.b32.xlu0 %v279, 80
    %v291 = vpop.permute.xlu0 %290
    %294 = vst.msk [vmem:[#allocation2 + $0x20] sm:$0xf] %vm264, %v289
    %295 = vst.msk [vmem:[#allocation2 + $0x24] sm:$0xf] %vm264, %v291
    %v296 = vld [vmem:[#allocation2] sm:$0xf]
    %v297 = vld [vmem:[#allocation2 + $0x4] sm:$0xf]
    %v298 = vld [vmem:[#allocation2 + $0x8] sm:$0xf]
    %v299 = vld [vmem:[#allocation2 + $0xc] sm:$0xf]
    %v300 = vld [vmem:[#allocation2 + $0x10] sm:$0xf]
    %v301 = vld [vmem:[#allocation2 + $0x14] sm:$0xf]
    %v302 = vld [vmem:[#allocation2 + $0x18] sm:$0xf]
    %v303 = vld [vmem:[#allocation2 + $0x1c] sm:$0xf]
    %304 = vst.msk [vmem:[#allocation3] sm:$0xf] %vm83, %v296
    %305 = vst.msk [vmem:[#allocation3 + $0xc] sm:$0xf] %vm83, %v297
    %306 = vst.msk [vmem:[#allocation3 + $0x18] sm:$0xf] %vm83, %v298
    %307 = vst.msk [vmem:[#allocation3 + $0x24] sm:$0xf] %vm83, %v299
    %308 = vst.msk [vmem:[#allocation3 + $0x30] sm:$0xf] %vm83, %v300
    %309 = vst.msk [vmem:[#allocation3 + $0x3c] sm:$0xf] %vm83, %v301
    %310 = vst.msk [vmem:[#allocation3 + $0x48] sm:$0xf] %vm83, %v302
    %311 = vst.msk [vmem:[#allocation3 + $0x54] sm:$0xf] %vm83, %v303
    %v312 = vld [vmem:[#allocation2 + $0x8] sm:$0xf]
    %v313 = vld [vmem:[#allocation2 + $0xc] sm:$0xf]
    %v314 = vld [vmem:[#allocation2 + $0x10] sm:$0xf]
    %v315 = vld [vmem:[#allocation2 + $0x14] sm:$0xf]
    %v316 = vld [vmem:[#allocation2 + $0x18] sm:$0xf]
    %v317 = vld [vmem:[#allocation2 + $0x1c] sm:$0xf]
    %v318 = vld [vmem:[#allocation2 + $0x20] sm:$0xf]
    %v319 = vld [vmem:[#allocation2 + $0x24] sm:$0xf]
    %328 = vrot.lane.b32.xlu0 %v312, 96
    %v329 = vpop.permute.xlu0 %328
    %330 = vrot.lane.b32.xlu0 %v313, 96
    %v331 = vpop.permute.xlu0 %330
    %332 = vrot.lane.b32.xlu0 %v314, 96
    %v333 = vpop.permute.xlu0 %332
    %334 = vrot.lane.b32.xlu0 %v315, 96
    %v335 = vpop.permute.xlu0 %334
    %336 = vrot.lane.b32.xlu0 %v316, 96
    %v337 = vpop.permute.xlu0 %336
    %338 = vrot.lane.b32.xlu0 %v317, 96
    %v339 = vpop.permute.xlu0 %338
    %340 = vrot.lane.b32.xlu0 %v318, 96
    %v341 = vpop.permute.xlu0 %340
    %342 = vrot.lane.b32.xlu0 %v319, 96
    %v343 = vpop.permute.xlu0 %342
    %v344 = vrot.slane %v329, 4
    %v345 = vrot.slane %v331, 4
    %v346 = vrot.slane %v333, 4
    %v347 = vrot.slane %v335, 4
    %v348 = vrot.slane %v337, 4
    %v349 = vrot.slane %v339, 4
    %v350 = vrot.slane %v341, 4
    %v351 = vrot.slane %v343, 4
    %vm352 = vcmask 785408
    %v353 = vsel %vm352, %v344, %v329
    %v354 = vsel %vm352, %v345, %v331
    %v355 = vsel %vm352, %v346, %v333
    %v356 = vsel %vm352, %v347, %v335
    %v357 = vsel %vm352, %v348, %v337
    %v358 = vsel %vm352, %v349, %v339
    %v359 = vsel %vm352, %v350, %v341
    %v360 = vsel %vm352, %v351, %v343
    %vm369 = vcmask 1044224
    %vm370 = vcmask 523268
    %vm371 = vmor %vm370, %vm369
    %372 = vst.msk [vmem:[#allocation3] sm:$0xff] %vm371, %v353
    %373 = vst.msk [vmem:[#allocation3 + $0xc] sm:$0xff] %vm371, %v354
    %374 = vst.msk [vmem:[#allocation3 + $0x18] sm:$0xff] %vm371, %v355
    %375 = vst.msk [vmem:[#allocation3 + $0x24] sm:$0xff] %vm371, %v356
    %376 = vst.msk [vmem:[#allocation3 + $0x30] sm:$0xff] %vm371, %v357
    %377 = vst.msk [vmem:[#allocation3 + $0x3c] sm:$0xff] %vm371, %v358
    %378 = vst.msk [vmem:[#allocation3 + $0x48] sm:$0xff] %vm371, %v359
    %379 = vst.msk [vmem:[#allocation3 + $0x54] sm:$0xff] %vm371, %v360
    %v380 = vld [vmem:[#allocation2 + $0x10] sm:$0xf]
    %v381 = vld [vmem:[#allocation2 + $0x14] sm:$0xf]
    %v382 = vld [vmem:[#allocation2 + $0x18] sm:$0xf]
    %v383 = vld [vmem:[#allocation2 + $0x1c] sm:$0xf]
    %v384 = vld [vmem:[#allocation2 + $0x20] sm:$0xf]
    %v385 = vld [vmem:[#allocation2 + $0x24] sm:$0xf]
    %v386 = vld [vmem:[#allocation2 + $0x28] sm:$0xf]
    %v387 = vld [vmem:[#allocation2 + $0x2c] sm:$0xf]
    %396 = vrot.lane.b32.xlu0 %v380, 64
    %v397 = vpop.permute.xlu0 %396
    %398 = vrot.lane.b32.xlu0 %v381, 64
    %v399 = vpop.permute.xlu0 %398
    %400 = vrot.lane.b32.xlu0 %v382, 64
    %v401 = vpop.permute.xlu0 %400
    %402 = vrot.lane.b32.xlu0 %v383, 64
    %v403 = vpop.permute.xlu0 %402
    %404 = vrot.lane.b32.xlu0 %v384, 64
    %v405 = vpop.permute.xlu0 %404
    %406 = vrot.lane.b32.xlu0 %v385, 64
    %v407 = vpop.permute.xlu0 %406
    %408 = vrot.lane.b32.xlu0 %v386, 64
    %v409 = vpop.permute.xlu0 %408
    %410 = vrot.lane.b32.xlu0 %v387, 64
    %v411 = vpop.permute.xlu0 %410
    %v412 = vrot.slane %v397, 4
    %v413 = vrot.slane %v399, 4
    %v414 = vrot.slane %v401, 4
    %v415 = vrot.slane %v403, 4
    %v416 = vrot.slane %v405, 4
    %v417 = vrot.slane %v407, 4
    %v418 = vrot.slane %v409, 4
    %v419 = vrot.slane %v411, 4
    %vm420 = vcmask 523264
    %v421 = vsel %vm420, %v412, %v397
    %v422 = vsel %vm420, %v413, %v399
    %v423 = vsel %vm420, %v414, %v401
    %v424 = vsel %vm420, %v415, %v403
    %v425 = vsel %vm420, %v416, %v405
    %v426 = vsel %vm420, %v417, %v407
    %v427 = vsel %vm420, %v418, %v409
    %v428 = vsel %vm420, %v419, %v411
    %vm437 = vcmask 1043968
    %vm438 = vcmask 261124
    %vm439 = vmor %vm438, %vm437
    %440 = vst.msk [vmem:[#allocation3 + $0x4] sm:$0xff] %vm439, %v421
    %441 = vst.msk [vmem:[#allocation3 + $0x10] sm:$0xff] %vm439, %v422
    %442 = vst.msk [vmem:[#allocation3 + $0x1c] sm:$0xff] %vm439, %v423
    %443 = vst.msk [vmem:[#allocation3 + $0x28] sm:$0xff] %vm439, %v424
    %444 = vst.msk [vmem:[#allocation3 + $0x34] sm:$0xff] %vm439, %v425
    %445 = vst.msk [vmem:[#allocation3 + $0x40] sm:$0xff] %vm439, %v426
    %446 = vst.msk [vmem:[#allocation3 + $0x4c] sm:$0xff] %vm439, %v427
    %447 = vst.msk [vmem:[#allocation3 + $0x58] sm:$0xff] %vm439, %v428
    %v448 = vld [vmem:[#allocation3] sm:$0xff]
    %v449 = vld [vmem:[#allocation3 + $0x8] sm:$0xf]
    %v450 = vld [vmem:[#allocation3 + $0xc] sm:$0xff]
    %v451 = vld [vmem:[#allocation3 + $0x14] sm:$0xf]
    %v452 = vld [vmem:[#allocation3 + $0x18] sm:$0xff]
    %v453 = vld [vmem:[#allocation3 + $0x20] sm:$0xf]
    %v454 = vld [vmem:[#allocation3 + $0x24] sm:$0xff]
    %v455 = vld [vmem:[#allocation3 + $0x2c] sm:$0xf]
    %v456 = vld [vmem:[#allocation3 + $0x30] sm:$0xff]
    %v457 = vld [vmem:[#allocation3 + $0x38] sm:$0xf]
    %v458 = vld [vmem:[#allocation3 + $0x3c] sm:$0xff]
    %v459 = vld [vmem:[#allocation3 + $0x44] sm:$0xf]
    %v460 = vld [vmem:[#allocation3 + $0x48] sm:$0xff]
    %v461 = vld [vmem:[#allocation3 + $0x50] sm:$0xf]
    %v462 = vld [vmem:[#allocation3 + $0x54] sm:$0xff]
    %v463 = vld [vmem:[#allocation3 + $0x5c] sm:$0xf]
    %v464 = vld [vmem:[#allocation11] sm:$0xf]
    %v465 = vld [vmem:[#allocation11 + $0x4] sm:$0xf]
    %v466 = vld [vmem:[#allocation11 + $0x8] sm:$0xf]
    %v467 = vld [vmem:[#allocation11 + $0xc] sm:$0xf]
    %v468 = vld [vmem:[#allocation11 + $0x10] sm:$0xf]
    %v469 = vld [vmem:[#allocation11 + $0x14] sm:$0xf]
    %v470 = vld [vmem:[#allocation11 + $0x18] sm:$0xf]
    %v471 = vld [vmem:[#allocation11 + $0x1c] sm:$0xf]
    %v472 = vld [vmem:[#allocation11 + $0x20] sm:$0xf]
    %v473 = vld [vmem:[#allocation11 + $0x24] sm:$0xf]
    %v474 = vld [vmem:[#allocation11 + $0x28] sm:$0xf]
    %v475 = vld [vmem:[#allocation11 + $0x2c] sm:$0xf]
    %v476 = vld [vmem:[#allocation11 + $0x30] sm:$0xf]
    %v477 = vld [vmem:[#allocation11 + $0x34] sm:$0xf]
    %v478 = vld [vmem:[#allocation11 + $0x38] sm:$0xf]
    %v479 = vld [vmem:[#allocation11 + $0x3c] sm:$0xf]
    %v480 = vld [vmem:[#allocation11 + $0x40] sm:$0xf]
    %v481 = vld [vmem:[#allocation11 + $0x44] sm:$0xf]
    %v482 = vld [vmem:[#allocation11 + $0x48] sm:$0xf]
    %v483 = vld [vmem:[#allocation11 + $0x4c] sm:$0xf]
    %v484 = vld [vmem:[#allocation11 + $0x50] sm:$0xf]
    %v485 = vld [vmem:[#allocation11 + $0x54] sm:$0xf]
    %v486 = vld [vmem:[#allocation11 + $0x58] sm:$0xf]
    %v487 = vld [vmem:[#allocation11 + $0x5c] sm:$0xf]
    %v488 = vld [vmem:[#allocation11 + $0x60] sm:$0xf]
    %v489 = vld [vmem:[#allocation11 + $0x64] sm:$0xf]
    %v490 = vld [vmem:[#allocation11 + $0x68] sm:$0xf]
    %v491 = vld [vmem:[#allocation11 + $0x6c] sm:$0xf]
    %v492 = vld [vmem:[#allocation11 + $0x70] sm:$0xf]
    %v493 = vld [vmem:[#allocation11 + $0x74] sm:$0xf]
    %v494 = vld [vmem:[#allocation11 + $0x78] sm:$0xf]
    %v495 = vld [vmem:[#allocation11 + $0x7c] sm:$0xf]
    %v496 = vld [vmem:[#allocation11 + $0x80] sm:$0xf]
    %v497 = vld [vmem:[#allocation11 + $0x84] sm:$0xf]
    %v498 = vld [vmem:[#allocation11 + $0x88] sm:$0xf]
    %v499 = vld [vmem:[#allocation11 + $0x8c] sm:$0xf]
    %v500 = vld [vmem:[%s4] sm:$0x1]
    %v502 = vlaneseq
    %v503 = vshrl.u32 %v502, 7
    %v504 = vsub.s32 0, %v503
    %v505 = vrot.slane %v500, %v504
    %v523 = vunpack.c.l.b16 %v448
    %v524 = vunpack.c.h.b16 %v448
    %v525 = vunpack.c.l.b16 %v449
    %v526 = vunpack.c.l.b16 %v450
    %v527 = vunpack.c.h.b16 %v450
    %v528 = vunpack.c.l.b16 %v451
    %v529 = vunpack.c.l.b16 %v452
    %v530 = vunpack.c.h.b16 %v452
    %v531 = vunpack.c.l.b16 %v453
    %v532 = vunpack.c.l.b16 %v454
    %v533 = vunpack.c.h.b16 %v454
    %v534 = vunpack.c.l.b16 %v455
    %v535 = vunpack.c.l.b16 %v456
    %v536 = vunpack.c.h.b16 %v456
    %v537 = vunpack.c.l.b16 %v457
    %v538 = vunpack.c.l.b16 %v458
    %v539 = vunpack.c.h.b16 %v458
    %v540 = vunpack.c.l.b16 %v459
    %v541 = vunpack.c.l.b16 %v460
    %v542 = vunpack.c.h.b16 %v460
    %v543 = vunpack.c.l.b16 %v461
    %v544 = vunpack.c.l.b16 %v462
    %v545 = vunpack.c.h.b16 %v462
    %v546 = vunpack.c.l.b16 %v463
    %v547 = vpack.c.b16 %v526, %v523
    %v548 = vpack.c.b16 %v527, %v524
    %v549 = vpack.c.b16 %v528, %v525
    %v550 = vpack.c.b16 %v532, %v529
    %v551 = vpack.c.b16 %v533, %v530
    %v552 = vpack.c.b16 %v534, %v531
    %v553 = vpack.c.b16 %v538, %v535
    %v554 = vpack.c.b16 %v539, %v536
    %v555 = vpack.c.b16 %v540, %v537
    %v556 = vpack.c.b16 %v544, %v541
    %v557 = vpack.c.b16 %v545, %v542
    %v558 = vpack.c.b16 %v546, %v543
    %v603 = vunpack.c.l.b16 %v464
    %v604 = vunpack.c.l.b16 %v465
    %v605 = vunpack.c.l.b16 %v466
    %v606 = vunpack.c.l.b16 %v467
    %v607 = vunpack.c.l.b16 %v468
    %v608 = vunpack.c.l.b16 %v469
    %v609 = vunpack.c.l.b16 %v470
    %v610 = vunpack.c.l.b16 %v471
    %v611 = vunpack.c.l.b16 %v472
    %v612 = vunpack.c.l.b16 %v473
    %v613 = vunpack.c.l.b16 %v474
    %v614 = vunpack.c.l.b16 %v475
    %v615 = vunpack.c.l.b16 %v476
    %v616 = vunpack.c.l.b16 %v477
    %v617 = vunpack.c.l.b16 %v478
    %v618 = vunpack.c.l.b16 %v479
    %v619 = vunpack.c.l.b16 %v480
    %v620 = vunpack.c.l.b16 %v481
    %v621 = vunpack.c.l.b16 %v482
    %v622 = vunpack.c.l.b16 %v483
    %v623 = vunpack.c.l.b16 %v484
    %v624 = vunpack.c.l.b16 %v485
    %v625 = vunpack.c.l.b16 %v486
    %v626 = vunpack.c.l.b16 %v487
    %v627 = vunpack.c.l.b16 %v488
    %v628 = vunpack.c.l.b16 %v489
    %v629 = vunpack.c.l.b16 %v490
    %v630 = vunpack.c.l.b16 %v491
    %v631 = vunpack.c.l.b16 %v492
    %v632 = vunpack.c.l.b16 %v493
    %v633 = vunpack.c.l.b16 %v494
    %v634 = vunpack.c.l.b16 %v495
    %v635 = vunpack.c.l.b16 %v496
    %v636 = vunpack.c.l.b16 %v497
    %v637 = vunpack.c.l.b16 %v498
    %v638 = vunpack.c.l.b16 %v499
    %v639 = vpack.c.b16 %v604, %v603
    %v640 = vpack.c.b16 %v606, %v605
    %v641 = vpack.c.b16 %v608, %v607
    %v642 = vpack.c.b16 %v610, %v609
    %v643 = vpack.c.b16 %v612, %v611
    %v644 = vpack.c.b16 %v614, %v613
    %v645 = vpack.c.b16 %v616, %v615
    %v646 = vpack.c.b16 %v618, %v617
    %v647 = vpack.c.b16 %v620, %v619
    %v648 = vpack.c.b16 %v622, %v621
    %v649 = vpack.c.b16 %v624, %v623
    %v650 = vpack.c.b16 %v626, %v625
    %v651 = vpack.c.b16 %v628, %v627
    %v652 = vpack.c.b16 %v630, %v629
    %v653 = vpack.c.b16 %v632, %v631
    %v654 = vpack.c.b16 %v634, %v633
    %v655 = vpack.c.b16 %v636, %v635
    %v656 = vpack.c.b16 %v638, %v637
    %v676 = vsel %vm200, %v549, 0
    %v679 = vsel %vm200, %v552, 0
    %v682 = vsel %vm200, %v555, 0
    %v685 = vsel %vm200, %v558, 0
    %687 = vmatprep.subr.bf16.mxu0 0
    %688 = vmatpush1.bf16.msra.mxu0 %v646
    %689 = vmatprep.subr.bf16.mxu0 0
    %690 = vmatpush1.bf16.msra.mxu0 %v645
    %691 = vmatprep.subr.bf16.mxu0 0
    %692 = vmatpush1.bf16.msra.mxu0 %v644
    %693 = vmatprep.subr.bf16.mxu0 0
    %694 = vmatpush1.bf16.msra.mxu0 %v643
    %695 = vmatprep.subr.bf16.mxu0 0
    %696 = vmatpush1.bf16.msra.mxu0 %v642
    %697 = vmatprep.subr.bf16.mxu0 0
    %698 = vmatpush1.bf16.msra.mxu0 %v641
    %699 = vmatprep.subr.bf16.mxu0 0
    %700 = vmatpush1.bf16.msra.mxu0 %v640
    %701 = vmatprep.subr.bf16.mxu0 0
    %702 = vmatpush1.bf16.msra.mxu0 %v639
    %703 = vmatprep.subr.bf16.mxu0 0
    %704 = vmatpush2.bf16.msra.mxu0 %v654
    %705 = vmatprep.subr.bf16.mxu0 0
    %706 = vmatpush2.bf16.msra.mxu0 %v653
    %707 = vmatprep.subr.bf16.mxu0 0
    %708 = vmatpush2.bf16.msra.mxu0 %v652
    %709 = vmatprep.subr.bf16.mxu0 0
    %710 = vmatpush2.bf16.msra.mxu0 %v651
    %711 = vmatprep.subr.bf16.mxu0 0
    %712 = vmatpush2.bf16.msra.mxu0 %v650
    %713 = vmatprep.subr.bf16.mxu0 0
    %714 = vmatpush2.bf16.msra.mxu0 %v649
    %715 = vmatprep.subr.bf16.mxu0 0
    %716 = vmatpush2.bf16.msra.mxu0 %v648
    %717 = vmatprep.subr.bf16.mxu0 0
    %718 = vmatpush2.bf16.msra.mxu0 %v647
    %719 = vmatprep.mubr.bf16.mxu0 %v548
    %720 = vmatmul.mubr.bf16.gmra.mxu0 %v547
    %v721 = vpop.f32.mrf.mxu0
    %v722 = vadd.f32 %v505, %v721
    %v723 = vpop.f32.mrf.mxu0
    %v724 = vpop.f32.mrf.mxu0
    %v725 = vadd.f32 %v505, %v724
    %v726 = vpop.f32.mrf.mxu0
    %727 = vmatprep.mubr.bf16.mxu0 %v551
    %728 = vmatmul.mubr.bf16.gmra.mxu0 %v550
    %v729 = vpop.f32.mrf.mxu0
    %v730 = vadd.f32 %v505, %v729
    %v731 = vpop.f32.mrf.mxu0
    %v732 = vpop.f32.mrf.mxu0
    %v733 = vadd.f32 %v505, %v732
    %v734 = vpop.f32.mrf.mxu0
    %735 = vmatprep.mubr.bf16.mxu0 %v554
    %736 = vmatmul.mubr.bf16.gmra.mxu0 %v553
    %v737 = vpop.f32.mrf.mxu0
    %v738 = vadd.f32 %v505, %v737
    %v739 = vpop.f32.mrf.mxu0
    %v740 = vpop.f32.mrf.mxu0
    %v741 = vadd.f32 %v505, %v740
    %v742 = vpop.f32.mrf.mxu0
    %743 = vmatprep.mubr.bf16.mxu0 %v557
    %744 = vmatmul.mubr.bf16.gmra.mxu0 %v556
    %v745 = vpop.f32.mrf.mxu0
    %v746 = vadd.f32 %v505, %v745
    %v747 = vpop.f32.mrf.mxu0
    %v748 = vpop.f32.mrf.mxu0
    %v749 = vadd.f32 %v505, %v748
    %v750 = vpop.f32.mrf.mxu0
    %751 = vdwg.mxu0
    %752 = vmatprep.subr.bf16.mxu0 0
    %753 = vmatpush1.bf16.msra.mxu0 0
    %754 = vmatprep.subr.bf16.mxu0 0
    %755 = vmatpush1.bf16.msra.mxu0 0
    %756 = vmatprep.subr.bf16.mxu0 0
    %757 = vmatpush1.bf16.msra.mxu0 0
    %758 = vmatprep.subr.bf16.mxu0 0
    %759 = vmatpush1.bf16.msra.mxu0 0
    %760 = vmatprep.subr.bf16.mxu0 0
    %761 = vmatpush1.bf16.msra.mxu0 0
    %762 = vmatprep.subr.bf16.mxu0 0
    %763 = vmatpush1.bf16.msra.mxu0 0
    %764 = vmatprep.subr.bf16.mxu0 0
    %765 = vmatpush1.bf16.msra.mxu0 %v656
    %766 = vmatprep.subr.bf16.mxu0 0
    %767 = vmatpush1.bf16.msra.mxu0 %v655
    %768 = vmatprep.subr.bf16.mxu0 0
    %769 = vmatpush2.bf16.msra.mxu0 0
    %770 = vmatprep.subr.bf16.mxu0 0
    %771 = vmatpush2.bf16.msra.mxu0 0
    %772 = vmatprep.subr.bf16.mxu0 0
    %773 = vmatpush2.bf16.msra.mxu0 0
    %774 = vmatprep.subr.bf16.mxu0 0
    %775 = vmatpush2.bf16.msra.mxu0 0
    %776 = vmatprep.subr.bf16.mxu0 0
    %777 = vmatpush2.bf16.msra.mxu0 0
    %778 = vmatprep.subr.bf16.mxu0 0
    %779 = vmatpush2.bf16.msra.mxu0 0
    %780 = vmatprep.subr.bf16.mxu0 0
    %781 = vmatpush2.bf16.msra.mxu0 0
    %782 = vmatprep.subr.bf16.mxu0 0
    %783 = vmatpush2.bf16.msra.mxu0 0
    %784 = vmatprep.mubr.bf16.mxu0 0
    %785 = vmatmul.mubr.bf16.gmra.mxu0 %v676
    %v786 = vpop.f32.mrf.mxu0
    %v787 = vadd.f32 %v722, %v786
    %v788 = vpop.f32.mrf.mxu0
    %v789 = vpop.f32.mrf.mxu0
    %v790 = vadd.f32 %v725, %v789
    %v791 = vpop.f32.mrf.mxu0
    %792 = vmatprep.mubr.bf16.mxu0 0
    %793 = vmatmul.mubr.bf16.gmra.mxu0 %v679
    %v794 = vpop.f32.mrf.mxu0
    %v795 = vadd.f32 %v730, %v794
    %v796 = vpop.f32.mrf.mxu0
    %v797 = vpop.f32.mrf.mxu0
    %v798 = vadd.f32 %v733, %v797
    %v799 = vpop.f32.mrf.mxu0
    %800 = vmatprep.mubr.bf16.mxu0 0
    %801 = vmatmul.mubr.bf16.gmra.mxu0 %v682
    %v802 = vpop.f32.mrf.mxu0
    %v803 = vadd.f32 %v738, %v802
    %v804 = vpop.f32.mrf.mxu0
    %v805 = vpop.f32.mrf.mxu0
    %v806 = vadd.f32 %v741, %v805
    %v807 = vpop.f32.mrf.mxu0
    %808 = vmatprep.mubr.bf16.mxu0 0
    %809 = vmatmul.mubr.bf16.gmra.mxu0 %v685
    %v810 = vpop.f32.mrf.mxu0
    %v811 = vadd.f32 %v746, %v810
    %v812 = vpop.f32.mrf.mxu0
    %v813 = vpop.f32.mrf.mxu0
    %v814 = vadd.f32 %v749, %v813
    %v815 = vpop.f32.mrf.mxu0
    %816 = vdwg.mxu0
    %v817 = vmax.f32 %v787, 0.0
    %v818 = vmax.f32 %v790, 0.0
    %v819 = vmax.f32 %v795, 0.0
    %v820 = vmax.f32 %v798, 0.0
    %v821 = vmax.f32 %v803, 0.0
    %v822 = vmax.f32 %v806, 0.0
    %v823 = vmax.f32 %v811, 0.0
    %v824 = vmax.f32 %v814, 0.0
    %v825 = vpack.c.bf16 %v818, %v817
    %v826 = vpack.c.bf16 %v820, %v819
    %v827 = vpack.c.bf16 %v822, %v821
    %v828 = vpack.c.bf16 %v824, %v823
    %v830 = vunpack.c.l.b16 %v825
    %v831 = vunpack.c.h.b16 %v825
    %v832 = vpack.c.b16 %v830, %v830
    %v833 = vpack.c.b16 %v831, %v831
    %834 = vrot.lane.b32.xlu0 %v832, 8
    %v835 = vpop.permute.xlu0 %834
    %836 = vrot.lane.b32.xlu0 %v833, 8
    %v837 = vpop.permute.xlu0 %836
    %vm840 = vcmask 584768
    %841 = vst.msk [vmem:[#allocation4 + $0x8] sm:$0xf] %vm840, %v835
    %842 = vst.msk [vmem:[#allocation4 + $0xc] sm:$0xf] %vm840, %v837
    %843 = vrot.lane.b32.xlu0 %v832, 72
    %v844 = vpop.permute.xlu0 %843
    %845 = vrot.lane.b32.xlu0 %v833, 72
    %v846 = vpop.permute.xlu0 %845
    %849 = vst.msk [vmem:[#allocation4 + $0x10] sm:$0xf] %vm840, %v844
    %850 = vst.msk [vmem:[#allocation4 + $0x14] sm:$0xf] %vm840, %v846
    %v852 = vunpack.c.l.b16 %v826
    %v853 = vunpack.c.h.b16 %v826
    %v854 = vpack.c.b16 %v852, %v852
    %v855 = vpack.c.b16 %v853, %v853
    %856 = vrot.lane.b32.xlu0 %v854, 8
    %v857 = vpop.permute.xlu0 %856
    %858 = vrot.lane.b32.xlu0 %v855, 8
    %v859 = vpop.permute.xlu0 %858
    %862 = vst.msk [vmem:[#allocation4 + $0x18] sm:$0xf] %vm840, %v857
    %863 = vst.msk [vmem:[#allocation4 + $0x1c] sm:$0xf] %vm840, %v859
    %864 = vrot.lane.b32.xlu0 %v854, 72
    %v865 = vpop.permute.xlu0 %864
    %866 = vrot.lane.b32.xlu0 %v855, 72
    %v867 = vpop.permute.xlu0 %866
    %870 = vst.msk [vmem:[#allocation4 + $0x20] sm:$0xf] %vm840, %v865
    %871 = vst.msk [vmem:[#allocation4 + $0x24] sm:$0xf] %vm840, %v867
    %v873 = vunpack.c.l.b16 %v827
    %v874 = vunpack.c.h.b16 %v827
    %v875 = vpack.c.b16 %v873, %v873
    %v876 = vpack.c.b16 %v874, %v874
    %877 = vrot.lane.b32.xlu0 %v875, 8
    %v878 = vpop.permute.xlu0 %877
    %879 = vrot.lane.b32.xlu0 %v876, 8
    %v880 = vpop.permute.xlu0 %879
    %883 = vst.msk [vmem:[#allocation4 + $0x28] sm:$0xf] %vm840, %v878
    %884 = vst.msk [vmem:[#allocation4 + $0x2c] sm:$0xf] %vm840, %v880
    %885 = vrot.lane.b32.xlu0 %v875, 72
    %v886 = vpop.permute.xlu0 %885
    %887 = vrot.lane.b32.xlu0 %v876, 72
    %v888 = vpop.permute.xlu0 %887
    %891 = vst.msk [vmem:[#allocation4 + $0x30] sm:$0xf] %vm840, %v886
    %892 = vst.msk [vmem:[#allocation4 + $0x34] sm:$0xf] %vm840, %v888
    %v894 = vunpack.c.l.b16 %v828
    %v895 = vunpack.c.h.b16 %v828
    %v896 = vpack.c.b16 %v894, %v894
    %v897 = vpack.c.b16 %v895, %v895
    %898 = vrot.lane.b32.xlu0 %v896, 8
    %v899 = vpop.permute.xlu0 %898
    %900 = vrot.lane.b32.xlu0 %v897, 8
    %v901 = vpop.permute.xlu0 %900
    %904 = vst.msk [vmem:[#allocation4 + $0x38] sm:$0xf] %vm840, %v899
    %905 = vst.msk [vmem:[#allocation4 + $0x3c] sm:$0xf] %vm840, %v901
    %906 = vrot.lane.b32.xlu0 %v896, 72
    %v907 = vpop.permute.xlu0 %906
    %908 = vrot.lane.b32.xlu0 %v897, 72
    %v909 = vpop.permute.xlu0 %908
    %912 = vst.msk [vmem:[#allocation4 + $0x40] sm:$0xf] %vm840, %v907
    %913 = vst.msk [vmem:[#allocation4 + $0x44] sm:$0xf] %vm840, %v909
    %v914 = vld [vmem:[#allocation4] sm:$0xf]
    %v915 = vld [vmem:[#allocation4 + $0x4] sm:$0xf]
    %v916 = vld [vmem:[#allocation4 + $0x8] sm:$0xf]
    %v917 = vld [vmem:[#allocation4 + $0xc] sm:$0xf]
    %v918 = vld [vmem:[#allocation4 + $0x10] sm:$0xf]
    %v919 = vld [vmem:[#allocation4 + $0x14] sm:$0xf]
    %v920 = vld [vmem:[#allocation4 + $0x18] sm:$0xf]
    %v921 = vld [vmem:[#allocation4 + $0x1c] sm:$0xf]
    %v922 = vld [vmem:[#allocation4 + $0x20] sm:$0xf]
    %v923 = vld [vmem:[#allocation4 + $0x24] sm:$0xf]
    %v924 = vld [vmem:[#allocation4 + $0x28] sm:$0xf]
    %v925 = vld [vmem:[#allocation4 + $0x2c] sm:$0xf]
    %v926 = vld [vmem:[#allocation4 + $0x30] sm:$0xf]
    %v927 = vld [vmem:[#allocation4 + $0x34] sm:$0xf]
    %v928 = vld [vmem:[#allocation4 + $0x38] sm:$0xf]
    %v929 = vld [vmem:[#allocation4 + $0x3c] sm:$0xf]
    %930 = vst.msk [vmem:[#allocation5] sm:$0xf] %vm114, %v914
    %931 = vst.msk [vmem:[#allocation5 + $0x8] sm:$0xf] %vm114, %v915
    %932 = vst.msk [vmem:[#allocation5 + $0x10] sm:$0xf] %vm114, %v916
    %933 = vst.msk [vmem:[#allocation5 + $0x18] sm:$0xf] %vm114, %v917
    %934 = vst.msk [vmem:[#allocation5 + $0x20] sm:$0xf] %vm114, %v918
    %935 = vst.msk [vmem:[#allocation5 + $0x28] sm:$0xf] %vm114, %v919
    %936 = vst.msk [vmem:[#allocation5 + $0x30] sm:$0xf] %vm114, %v920
    %937 = vst.msk [vmem:[#allocation5 + $0x38] sm:$0xf] %vm114, %v921
    %938 = vst.msk [vmem:[#allocation5 + $0x40] sm:$0xf] %vm114, %v922
    %939 = vst.msk [vmem:[#allocation5 + $0x48] sm:$0xf] %vm114, %v923
    %940 = vst.msk [vmem:[#allocation5 + $0x50] sm:$0xf] %vm114, %v924
    %941 = vst.msk [vmem:[#allocation5 + $0x58] sm:$0xf] %vm114, %v925
    %942 = vst.msk [vmem:[#allocation5 + $0x60] sm:$0xf] %vm114, %v926
    %943 = vst.msk [vmem:[#allocation5 + $0x68] sm:$0xf] %vm114, %v927
    %944 = vst.msk [vmem:[#allocation5 + $0x70] sm:$0xf] %vm114, %v928
    %945 = vst.msk [vmem:[#allocation5 + $0x78] sm:$0xf] %vm114, %v929
    %v946 = vld [vmem:[#allocation4 + $0x8] sm:$0xf]
    %v947 = vld [vmem:[#allocation4 + $0xc] sm:$0xf]
    %v948 = vld [vmem:[#allocation4 + $0x10] sm:$0xf]
    %v949 = vld [vmem:[#allocation4 + $0x14] sm:$0xf]
    %v950 = vld [vmem:[#allocation4 + $0x18] sm:$0xf]
    %v951 = vld [vmem:[#allocation4 + $0x1c] sm:$0xf]
    %v952 = vld [vmem:[#allocation4 + $0x20] sm:$0xf]
    %v953 = vld [vmem:[#allocation4 + $0x24] sm:$0xf]
    %v954 = vld [vmem:[#allocation4 + $0x28] sm:$0xf]
    %v955 = vld [vmem:[#allocation4 + $0x2c] sm:$0xf]
    %v956 = vld [vmem:[#allocation4 + $0x30] sm:$0xf]
    %v957 = vld [vmem:[#allocation4 + $0x34] sm:$0xf]
    %v958 = vld [vmem:[#allocation4 + $0x38] sm:$0xf]
    %v959 = vld [vmem:[#allocation4 + $0x3c] sm:$0xf]
    %v960 = vld [vmem:[#allocation4 + $0x40] sm:$0xf]
    %v961 = vld [vmem:[#allocation4 + $0x44] sm:$0xf]
    %978 = vrot.lane.b32.xlu0 %v946, 80
    %v979 = vpop.permute.xlu0 %978
    %980 = vrot.lane.b32.xlu0 %v947, 80
    %v981 = vpop.permute.xlu0 %980
    %982 = vrot.lane.b32.xlu0 %v948, 80
    %v983 = vpop.permute.xlu0 %982
    %984 = vrot.lane.b32.xlu0 %v949, 80
    %v985 = vpop.permute.xlu0 %984
    %986 = vrot.lane.b32.xlu0 %v950, 80
    %v987 = vpop.permute.xlu0 %986
    %988 = vrot.lane.b32.xlu0 %v951, 80
    %v989 = vpop.permute.xlu0 %988
    %990 = vrot.lane.b32.xlu0 %v952, 80
    %v991 = vpop.permute.xlu0 %990
    %992 = vrot.lane.b32.xlu0 %v953, 80
    %v993 = vpop.permute.xlu0 %992
    %994 = vrot.lane.b32.xlu0 %v954, 80
    %v995 = vpop.permute.xlu0 %994
    %996 = vrot.lane.b32.xlu0 %v955, 80
    %v997 = vpop.permute.xlu0 %996
    %998 = vrot.lane.b32.xlu0 %v956, 80
    %v999 = vpop.permute.xlu0 %998
    %1000 = vrot.lane.b32.xlu0 %v957, 80
    %v1001 = vpop.permute.xlu0 %1000
    %1002 = vrot.lane.b32.xlu0 %v958, 80
    %v1003 = vpop.permute.xlu0 %1002
    %1004 = vrot.lane.b32.xlu0 %v959, 80
    %v1005 = vpop.permute.xlu0 %1004
    %1006 = vrot.lane.b32.xlu0 %v960, 80
    %v1007 = vpop.permute.xlu0 %1006
    %1008 = vrot.lane.b32.xlu0 %v961, 80
    %v1009 = vpop.permute.xlu0 %1008
    %v1010 = vrot.slane %v979, 4
    %v1011 = vrot.slane %v981, 4
    %v1012 = vrot.slane %v983, 4
    %v1013 = vrot.slane %v985, 4
    %v1014 = vrot.slane %v987, 4
    %v1015 = vrot.slane %v989, 4
    %v1016 = vrot.slane %v991, 4
    %v1017 = vrot.slane %v993, 4
    %v1018 = vrot.slane %v995, 4
    %v1019 = vrot.slane %v997, 4
    %v1020 = vrot.slane %v999, 4
    %v1021 = vrot.slane %v1001, 4
    %v1022 = vrot.slane %v1003, 4
    %v1023 = vrot.slane %v1005, 4
    %v1024 = vrot.slane %v1007, 4
    %v1025 = vrot.slane %v1009, 4
    %vm1026 = vcmask 654336
    %v1027 = vsel %vm1026, %v1010, %v979
    %v1028 = vsel %vm1026, %v1011, %v981
    %v1029 = vsel %vm1026, %v1012, %v983
    %v1030 = vsel %vm1026, %v1013, %v985
    %v1031 = vsel %vm1026, %v1014, %v987
    %v1032 = vsel %vm1026, %v1015, %v989
    %v1033 = vsel %vm1026, %v1016, %v991
    %v1034 = vsel %vm1026, %v1017, %v993
    %v1035 = vsel %vm1026, %v1018, %v995
    %v1036 = vsel %vm1026, %v1019, %v997
    %v1037 = vsel %vm1026, %v1020, %v999
    %v1038 = vsel %vm1026, %v1021, %v1001
    %v1039 = vsel %vm1026, %v1022, %v1003
    %v1040 = vsel %vm1026, %v1023, %v1005
    %v1041 = vsel %vm1026, %v1024, %v1007
    %v1042 = vsel %vm1026, %v1025, %v1009
    %vm1059 = vcmask 1044096
    %vm1060 = vmor %vm438, %vm1059
    %1061 = vst.msk [vmem:[#allocation5] sm:$0xff] %vm1060, %v1027
    %1062 = vst.msk [vmem:[#allocation5 + $0x8] sm:$0xff] %vm1060, %v1028
    %1063 = vst.msk [vmem:[#allocation5 + $0x10] sm:$0xff] %vm1060, %v1029
    %1064 = vst.msk [vmem:[#allocation5 + $0x18] sm:$0xff] %vm1060, %v1030
    %1065 = vst.msk [vmem:[#allocation5 + $0x20] sm:$0xff] %vm1060, %v1031
    %1066 = vst.msk [vmem:[#allocation5 + $0x28] sm:$0xff] %vm1060, %v1032
    %1067 = vst.msk [vmem:[#allocation5 + $0x30] sm:$0xff] %vm1060, %v1033
    %1068 = vst.msk [vmem:[#allocation5 + $0x38] sm:$0xff] %vm1060, %v1034
    %1069 = vst.msk [vmem:[#allocation5 + $0x40] sm:$0xff] %vm1060, %v1035
    %1070 = vst.msk [vmem:[#allocation5 + $0x48] sm:$0xff] %vm1060, %v1036
    %1071 = vst.msk [vmem:[#allocation5 + $0x50] sm:$0xff] %vm1060, %v1037
    %1072 = vst.msk [vmem:[#allocation5 + $0x58] sm:$0xff] %vm1060, %v1038
    %1073 = vst.msk [vmem:[#allocation5 + $0x60] sm:$0xff] %vm1060, %v1039
    %1074 = vst.msk [vmem:[#allocation5 + $0x68] sm:$0xff] %vm1060, %v1040
    %1075 = vst.msk [vmem:[#allocation5 + $0x70] sm:$0xff] %vm1060, %v1041
    %1076 = vst.msk [vmem:[#allocation5 + $0x78] sm:$0xff] %vm1060, %v1042
    %v1077 = vld [vmem:[#allocation4 + $0x10] sm:$0xf]
    %v1078 = vld [vmem:[#allocation4 + $0x14] sm:$0xf]
    %v1079 = vld [vmem:[#allocation4 + $0x18] sm:$0xf]
    %v1080 = vld [vmem:[#allocation4 + $0x1c] sm:$0xf]
    %v1081 = vld [vmem:[#allocation4 + $0x20] sm:$0xf]
    %v1082 = vld [vmem:[#allocation4 + $0x24] sm:$0xf]
    %v1083 = vld [vmem:[#allocation4 + $0x28] sm:$0xf]
    %v1084 = vld [vmem:[#allocation4 + $0x2c] sm:$0xf]
    %v1085 = vld [vmem:[#allocation4 + $0x30] sm:$0xf]
    %v1086 = vld [vmem:[#allocation4 + $0x34] sm:$0xf]
    %v1087 = vld [vmem:[#allocation4 + $0x38] sm:$0xf]
    %v1088 = vld [vmem:[#allocation4 + $0x3c] sm:$0xf]
    %v1089 = vld [vmem:[#allocation4 + $0x40] sm:$0xf]
    %v1090 = vld [vmem:[#allocation4 + $0x44] sm:$0xf]
    %v1091 = vld [vmem:[#allocation4 + $0x48] sm:$0xf]
    %v1092 = vld [vmem:[#allocation4 + $0x4c] sm:$0xf]
    %1109 = vrot.lane.b32.xlu0 %v1077, 32
    %v1110 = vpop.permute.xlu0 %1109
    %1111 = vrot.lane.b32.xlu0 %v1078, 32
    %v1112 = vpop.permute.xlu0 %1111
    %1113 = vrot.lane.b32.xlu0 %v1079, 32
    %v1114 = vpop.permute.xlu0 %1113
    %1115 = vrot.lane.b32.xlu0 %v1080, 32
    %v1116 = vpop.permute.xlu0 %1115
    %1117 = vrot.lane.b32.xlu0 %v1081, 32
    %v1118 = vpop.permute.xlu0 %1117
    %1119 = vrot.lane.b32.xlu0 %v1082, 32
    %v1120 = vpop.permute.xlu0 %1119
    %1121 = vrot.lane.b32.xlu0 %v1083, 32
    %v1122 = vpop.permute.xlu0 %1121
    %1123 = vrot.lane.b32.xlu0 %v1084, 32
    %v1124 = vpop.permute.xlu0 %1123
    %1125 = vrot.lane.b32.xlu0 %v1085, 32
    %v1126 = vpop.permute.xlu0 %1125
    %1127 = vrot.lane.b32.xlu0 %v1086, 32
    %v1128 = vpop.permute.xlu0 %1127
    %1129 = vrot.lane.b32.xlu0 %v1087, 32
    %v1130 = vpop.permute.xlu0 %1129
    %1131 = vrot.lane.b32.xlu0 %v1088, 32
    %v1132 = vpop.permute.xlu0 %1131
    %1133 = vrot.lane.b32.xlu0 %v1089, 32
    %v1134 = vpop.permute.xlu0 %1133
    %1135 = vrot.lane.b32.xlu0 %v1090, 32
    %v1136 = vpop.permute.xlu0 %1135
    %1137 = vrot.lane.b32.xlu0 %v1091, 32
    %v1138 = vpop.permute.xlu0 %1137
    %1139 = vrot.lane.b32.xlu0 %v1092, 32
    %v1140 = vpop.permute.xlu0 %1139
    %vm1157 = vcmask 912640
    %1158 = vst.msk [vmem:[#allocation5 + $0x4] sm:$0xf] %vm1157, %v1110
    %1159 = vst.msk [vmem:[#allocation5 + $0xc] sm:$0xf] %vm1157, %v1112
    %1160 = vst.msk [vmem:[#allocation5 + $0x14] sm:$0xf] %vm1157, %v1114
    %1161 = vst.msk [vmem:[#allocation5 + $0x1c] sm:$0xf] %vm1157, %v1116
    %1162 = vst.msk [vmem:[#allocation5 + $0x24] sm:$0xf] %vm1157, %v1118
    %1163 = vst.msk [vmem:[#allocation5 + $0x2c] sm:$0xf] %vm1157, %v1120
    %1164 = vst.msk [vmem:[#allocation5 + $0x34] sm:$0xf] %vm1157, %v1122
    %1165 = vst.msk [vmem:[#allocation5 + $0x3c] sm:$0xf] %vm1157, %v1124
    %1166 = vst.msk [vmem:[#allocation5 + $0x44] sm:$0xf] %vm1157, %v1126
    %1167 = vst.msk [vmem:[#allocation5 + $0x4c] sm:$0xf] %vm1157, %v1128
    %1168 = vst.msk [vmem:[#allocation5 + $0x54] sm:$0xf] %vm1157, %v1130
    %1169 = vst.msk [vmem:[#allocation5 + $0x5c] sm:$0xf] %vm1157, %v1132
    %1170 = vst.msk [vmem:[#allocation5 + $0x64] sm:$0xf] %vm1157, %v1134
    %1171 = vst.msk [vmem:[#allocation5 + $0x6c] sm:$0xf] %vm1157, %v1136
    %1172 = vst.msk [vmem:[#allocation5 + $0x74] sm:$0xf] %vm1157, %v1138
    %1173 = vst.msk [vmem:[#allocation5 + $0x7c] sm:$0xf] %vm1157, %v1140
    %v1174 = vld [vmem:[#allocation5] sm:$0xff]
    %v1175 = vld [vmem:[#allocation5 + $0x8] sm:$0xff]
    %v1176 = vld [vmem:[#allocation5 + $0x10] sm:$0xff]
    %v1177 = vld [vmem:[#allocation5 + $0x18] sm:$0xff]
    %v1178 = vld [vmem:[#allocation5 + $0x20] sm:$0xff]
    %v1179 = vld [vmem:[#allocation5 + $0x28] sm:$0xff]
    %v1180 = vld [vmem:[#allocation5 + $0x30] sm:$0xff]
    %v1181 = vld [vmem:[#allocation5 + $0x38] sm:$0xff]
    %v1182 = vld [vmem:[#allocation5 + $0x40] sm:$0xff]
    %v1183 = vld [vmem:[#allocation5 + $0x48] sm:$0xff]
    %v1184 = vld [vmem:[#allocation5 + $0x50] sm:$0xff]
    %v1185 = vld [vmem:[#allocation5 + $0x58] sm:$0xff]
    %v1186 = vld [vmem:[#allocation5 + $0x60] sm:$0xff]
    %v1187 = vld [vmem:[#allocation5 + $0x68] sm:$0xff]
    %v1188 = vld [vmem:[#allocation5 + $0x70] sm:$0xff]
    %v1189 = vld [vmem:[#allocation5 + $0x78] sm:$0xff]
    %v1190 = vld [vmem:[#allocation12] sm:$0xf]
    %v1191 = vld [vmem:[#allocation12 + $0x4] sm:$0xf]
    %v1192 = vld [vmem:[#allocation12 + $0x8] sm:$0xf]
    %v1193 = vld [vmem:[#allocation12 + $0xc] sm:$0xf]
    %v1194 = vld [vmem:[#allocation12 + $0x10] sm:$0xf]
    %v1195 = vld [vmem:[#allocation12 + $0x14] sm:$0xf]
    %v1196 = vld [vmem:[#allocation12 + $0x18] sm:$0xf]
    %v1197 = vld [vmem:[#allocation12 + $0x1c] sm:$0xf]
    %v1198 = vld [vmem:[#allocation12 + $0x20] sm:$0xf]
    %v1199 = vld [vmem:[#allocation12 + $0x24] sm:$0xf]
    %v1200 = vld [vmem:[#allocation12 + $0x28] sm:$0xf]
    %v1201 = vld [vmem:[#allocation12 + $0x2c] sm:$0xf]
    %v1202 = vld [vmem:[#allocation12 + $0x30] sm:$0xf]
    %v1203 = vld [vmem:[#allocation12 + $0x34] sm:$0xf]
    %v1204 = vld [vmem:[#allocation12 + $0x38] sm:$0xf]
    %v1205 = vld [vmem:[#allocation12 + $0x3c] sm:$0xf]
    %v1206 = vld [vmem:[#allocation12 + $0x40] sm:$0xf]
    %v1207 = vld [vmem:[#allocation12 + $0x44] sm:$0xf]
    %v1208 = vld [vmem:[#allocation12 + $0x48] sm:$0xf]
    %v1209 = vld [vmem:[#allocation12 + $0x4c] sm:$0xf]
    %v1210 = vld [vmem:[#allocation12 + $0x50] sm:$0xf]
    %v1211 = vld [vmem:[#allocation12 + $0x54] sm:$0xf]
    %v1212 = vld [vmem:[#allocation12 + $0x58] sm:$0xf]
    %v1213 = vld [vmem:[#allocation12 + $0x5c] sm:$0xf]
    %v1214 = vld [vmem:[#allocation12 + $0x60] sm:$0xf]
    %v1215 = vld [vmem:[#allocation12 + $0x64] sm:$0xf]
    %v1216 = vld [vmem:[#allocation12 + $0x68] sm:$0xf]
    %v1217 = vld [vmem:[#allocation12 + $0x6c] sm:$0xf]
    %v1218 = vld [vmem:[#allocation12 + $0x70] sm:$0xf]
    %v1219 = vld [vmem:[#allocation12 + $0x74] sm:$0xf]
    %v1220 = vld [vmem:[%s6] sm:$0x1]
    %v1222 = vlaneseq
    %v1223 = vshrl.u32 %v1222, 7
    %v1224 = vsub.s32 0, %v1223
    %v1225 = vrot.slane %v1220, %v1224
    %v1243 = vunpack.c.l.b16 %v1174
    %v1244 = vunpack.c.h.b16 %v1174
    %v1245 = vunpack.c.l.b16 %v1175
    %v1246 = vunpack.c.h.b16 %v1175
    %v1247 = vunpack.c.l.b16 %v1176
    %v1248 = vunpack.c.h.b16 %v1176
    %v1249 = vunpack.c.l.b16 %v1177
    %v1250 = vunpack.c.h.b16 %v1177
    %v1251 = vunpack.c.l.b16 %v1178
    %v1252 = vunpack.c.h.b16 %v1178
    %v1253 = vunpack.c.l.b16 %v1179
    %v1254 = vunpack.c.h.b16 %v1179
    %v1255 = vunpack.c.l.b16 %v1180
    %v1256 = vunpack.c.h.b16 %v1180
    %v1257 = vunpack.c.l.b16 %v1181
    %v1258 = vunpack.c.h.b16 %v1181
    %v1259 = vunpack.c.l.b16 %v1182
    %v1260 = vunpack.c.h.b16 %v1182
    %v1261 = vunpack.c.l.b16 %v1183
    %v1262 = vunpack.c.h.b16 %v1183
    %v1263 = vunpack.c.l.b16 %v1184
    %v1264 = vunpack.c.h.b16 %v1184
    %v1265 = vunpack.c.l.b16 %v1185
    %v1266 = vunpack.c.h.b16 %v1185
    %v1267 = vunpack.c.l.b16 %v1186
    %v1268 = vunpack.c.h.b16 %v1186
    %v1269 = vunpack.c.l.b16 %v1187
    %v1270 = vunpack.c.h.b16 %v1187
    %v1271 = vunpack.c.l.b16 %v1188
    %v1272 = vunpack.c.h.b16 %v1188
    %v1273 = vunpack.c.l.b16 %v1189
    %v1274 = vunpack.c.h.b16 %v1189
    %v1275 = vpack.c.b16 %v1245, %v1243
    %v1276 = vpack.c.b16 %v1246, %v1244
    %v1277 = vpack.c.b16 %v1249, %v1247
    %v1278 = vpack.c.b16 %v1250, %v1248
    %v1279 = vpack.c.b16 %v1253, %v1251
    %v1280 = vpack.c.b16 %v1254, %v1252
    %v1281 = vpack.c.b16 %v1257, %v1255
    %v1282 = vpack.c.b16 %v1258, %v1256
    %v1283 = vpack.c.b16 %v1261, %v1259
    %v1284 = vpack.c.b16 %v1262, %v1260
    %v1285 = vpack.c.b16 %v1265, %v1263
    %v1286 = vpack.c.b16 %v1266, %v1264
    %v1287 = vpack.c.b16 %v1269, %v1267
    %v1288 = vpack.c.b16 %v1270, %v1268
    %v1289 = vpack.c.b16 %v1273, %v1271
    %v1290 = vpack.c.b16 %v1274, %v1272
    %v1329 = vunpack.c.l.b16 %v1190
    %v1330 = vunpack.c.l.b16 %v1191
    %v1331 = vunpack.c.l.b16 %v1192
    %v1332 = vunpack.c.l.b16 %v1193
    %v1333 = vunpack.c.l.b16 %v1194
    %v1334 = vunpack.c.l.b16 %v1195
    %v1335 = vunpack.c.l.b16 %v1196
    %v1336 = vunpack.c.l.b16 %v1197
    %v1337 = vunpack.c.l.b16 %v1198
    %v1338 = vunpack.c.l.b16 %v1199
    %v1339 = vunpack.c.l.b16 %v1200
    %v1340 = vunpack.c.l.b16 %v1201
    %v1341 = vunpack.c.l.b16 %v1202
    %v1342 = vunpack.c.l.b16 %v1203
    %v1343 = vunpack.c.l.b16 %v1204
    %v1344 = vunpack.c.l.b16 %v1205
    %v1345 = vunpack.c.l.b16 %v1206
    %v1346 = vunpack.c.l.b16 %v1207
    %v1347 = vunpack.c.l.b16 %v1208
    %v1348 = vunpack.c.l.b16 %v1209
    %v1349 = vunpack.c.l.b16 %v1210
    %v1350 = vunpack.c.l.b16 %v1211
    %v1351 = vunpack.c.l.b16 %v1212
    %v1352 = vunpack.c.l.b16 %v1213
    %v1353 = vunpack.c.l.b16 %v1214
    %v1354 = vunpack.c.l.b16 %v1215
    %v1355 = vunpack.c.l.b16 %v1216
    %v1356 = vunpack.c.l.b16 %v1217
    %v1357 = vunpack.c.l.b16 %v1218
    %v1358 = vunpack.c.l.b16 %v1219
    %v1359 = vpack.c.b16 %v1330, %v1329
    %v1360 = vpack.c.b16 %v1332, %v1331
    %v1361 = vpack.c.b16 %v1334, %v1333
    %v1362 = vpack.c.b16 %v1336, %v1335
    %v1363 = vpack.c.b16 %v1338, %v1337
    %v1364 = vpack.c.b16 %v1340, %v1339
    %v1365 = vpack.c.b16 %v1342, %v1341
    %v1366 = vpack.c.b16 %v1344, %v1343
    %v1367 = vpack.c.b16 %v1346, %v1345
    %v1368 = vpack.c.b16 %v1348, %v1347
    %v1369 = vpack.c.b16 %v1350, %v1349
    %v1370 = vpack.c.b16 %v1352, %v1351
    %v1371 = vpack.c.b16 %v1354, %v1353
    %v1372 = vpack.c.b16 %v1356, %v1355
    %v1373 = vpack.c.b16 %v1358, %v1357
    %vm1389 = vcmask 916480
    %v1391 = vsel %vm1389, %v1276, 0
    %v1394 = vsel %vm1389, %v1278, 0
    %v1397 = vsel %vm1389, %v1280, 0
    %v1400 = vsel %vm1389, %v1282, 0
    %v1403 = vsel %vm1389, %v1284, 0
    %v1406 = vsel %vm1389, %v1286, 0
    %v1409 = vsel %vm1389, %v1288, 0
    %v1412 = vsel %vm1389, %v1290, 0
    %1414 = vmatprep.subr.bf16.mxu0 0
    %1415 = vmatpush1.bf16.msra.mxu0 %v1366
    %1416 = vmatprep.subr.bf16.mxu0 0
    %1417 = vmatpush1.bf16.msra.mxu0 %v1365
    %1418 = vmatprep.subr.bf16.mxu0 0
    %1419 = vmatpush1.bf16.msra.mxu0 %v1364
    %1420 = vmatprep.subr.bf16.mxu0 0
    %1421 = vmatpush1.bf16.msra.mxu0 %v1363
    %1422 = vmatprep.subr.bf16.mxu0 0
    %1423 = vmatpush1.bf16.msra.mxu0 %v1362
    %1424 = vmatprep.subr.bf16.mxu0 0
    %1425 = vmatpush1.bf16.msra.mxu0 %v1361
    %1426 = vmatprep.subr.bf16.mxu0 0
    %1427 = vmatpush1.bf16.msra.mxu0 %v1360
    %1428 = vmatprep.subr.bf16.mxu0 0
    %1429 = vmatpush1.bf16.msra.mxu0 %v1359
    %1430 = vmatprep.subr.bf16.mxu0 0
    %1431 = vmatpush2.bf16.msra.mxu0 0
    %1432 = vmatprep.subr.bf16.mxu0 0
    %1433 = vmatpush2.bf16.msra.mxu0 %v1373
    %1434 = vmatprep.subr.bf16.mxu0 0
    %1435 = vmatpush2.bf16.msra.mxu0 %v1372
    %1436 = vmatprep.subr.bf16.mxu0 0
    %1437 = vmatpush2.bf16.msra.mxu0 %v1371
    %1438 = vmatprep.subr.bf16.mxu0 0
    %1439 = vmatpush2.bf16.msra.mxu0 %v1370
    %1440 = vmatprep.subr.bf16.mxu0 0
    %1441 = vmatpush2.bf16.msra.mxu0 %v1369
    %1442 = vmatprep.subr.bf16.mxu0 0
    %1443 = vmatpush2.bf16.msra.mxu0 %v1368
    %1444 = vmatprep.subr.bf16.mxu0 0
    %1445 = vmatpush2.bf16.msra.mxu0 %v1367
    %1446 = vmatprep.mubr.bf16.mxu0 %v1391
    %1447 = vmatmul.mubr.bf16.gmra.mxu0 %v1275
    %v1448 = vpop.f32.mrf.mxu0
    %v1449 = vadd.f32 %v1225, %v1448
    %v1450 = vpop.f32.mrf.mxu0
    %v1451 = vpop.f32.mrf.mxu0
    %v1452 = vadd.f32 %v1225, %v1451
    %v1453 = vpop.f32.mrf.mxu0
    %1454 = vmatprep.mubr.bf16.mxu0 %v1394
    %1455 = vmatmul.mubr.bf16.gmra.mxu0 %v1277
    %v1456 = vpop.f32.mrf.mxu0
    %v1457 = vadd.f32 %v1225, %v1456
    %v1458 = vpop.f32.mrf.mxu0
    %v1459 = vpop.f32.mrf.mxu0
    %v1460 = vadd.f32 %v1225, %v1459
    %v1461 = vpop.f32.mrf.mxu0
    %1462 = vmatprep.mubr.bf16.mxu0 %v1397
    %1463 = vmatmul.mubr.bf16.gmra.mxu0 %v1279
    %v1464 = vpop.f32.mrf.mxu0
    %v1465 = vadd.f32 %v1225, %v1464
    %v1466 = vpop.f32.mrf.mxu0
    %v1467 = vpop.f32.mrf.mxu0
    %v1468 = vadd.f32 %v1225, %v1467
    %v1469 = vpop.f32.mrf.mxu0
    %1470 = vmatprep.mubr.bf16.mxu0 %v1400
    %1471 = vmatmul.mubr.bf16.gmra.mxu0 %v1281
    %v1472 = vpop.f32.mrf.mxu0
    %v1473 = vadd.f32 %v1225, %v1472
    %v1474 = vpop.f32.mrf.mxu0
    %v1475 = vpop.f32.mrf.mxu0
    %v1476 = vadd.f32 %v1225, %v1475
    %v1477 = vpop.f32.mrf.mxu0
    %1478 = vmatprep.mubr.bf16.mxu0 %v1403
    %1479 = vmatmul.mubr.bf16.gmra.mxu0 %v1283
    %v1480 = vpop.f32.mrf.mxu0
    %v1481 = vadd.f32 %v1225, %v1480
    %v1482 = vpop.f32.mrf.mxu0
    %v1483 = vpop.f32.mrf.mxu0
    %v1484 = vadd.f32 %v1225, %v1483
    %v1485 = vpop.f32.mrf.mxu0
    %1486 = vmatprep.mubr.bf16.mxu0 %v1406
    %1487 = vmatmul.mubr.bf16.gmra.mxu0 %v1285
    %v1488 = vpop.f32.mrf.mxu0
    %v1489 = vadd.f32 %v1225, %v1488
    %v1490 = vpop.f32.mrf.mxu0
    %v1491 = vpop.f32.mrf.mxu0
    %v1492 = vadd.f32 %v1225, %v1491
    %v1493 = vpop.f32.mrf.mxu0
    %1494 = vmatprep.mubr.bf16.mxu0 %v1409
    %1495 = vmatmul.mubr.bf16.gmra.mxu0 %v1287
    %v1496 = vpop.f32.mrf.mxu0
    %v1497 = vadd.f32 %v1225, %v1496
    %v1498 = vpop.f32.mrf.mxu0
    %v1499 = vpop.f32.mrf.mxu0
    %v1500 = vadd.f32 %v1225, %v1499
    %v1501 = vpop.f32.mrf.mxu0
    %1502 = vmatprep.mubr.bf16.mxu0 %v1412
    %1503 = vmatmul.mubr.bf16.gmra.mxu0 %v1289
    %v1504 = vpop.f32.mrf.mxu0
    %v1505 = vadd.f32 %v1225, %v1504
    %v1506 = vpop.f32.mrf.mxu0
    %v1507 = vpop.f32.mrf.mxu0
    %v1508 = vadd.f32 %v1225, %v1507
    %v1509 = vpop.f32.mrf.mxu0
    %1510 = vdwg.mxu0
    %v1511 = vsub.f32 0.0, %v1449
    %v1512 = vsub.f32 0.0, %v1452
    %v1513 = vsub.f32 0.0, %v1457
    %v1514 = vsub.f32 0.0, %v1460
    %v1515 = vsub.f32 0.0, %v1465
    %v1516 = vsub.f32 0.0, %v1468
    %v1517 = vsub.f32 0.0, %v1473
    %v1518 = vsub.f32 0.0, %v1476
    %v1519 = vsub.f32 0.0, %v1481
    %v1520 = vsub.f32 0.0, %v1484
    %v1521 = vsub.f32 0.0, %v1489
    %v1522 = vsub.f32 0.0, %v1492
    %v1523 = vsub.f32 0.0, %v1497
    %v1524 = vsub.f32 0.0, %v1500
    %v1525 = vsub.f32 0.0, %v1505
    %v1526 = vsub.f32 0.0, %v1508
    %v1527 = vmul.f32 %v1511, 1.442695
    %v1528 = vpow.pop %v1527
    %v1529 = vmul.f32 %v1512, 1.442695
    %v1530 = vpow.pop %v1529
    %v1531 = vmul.f32 %v1513, 1.442695
    %v1532 = vpow.pop %v1531
    %v1533 = vmul.f32 %v1514, 1.442695
    %v1534 = vpow.pop %v1533
    %v1535 = vmul.f32 %v1515, 1.442695
    %v1536 = vpow.pop %v1535
    %v1537 = vmul.f32 %v1516, 1.442695
    %v1538 = vpow.pop %v1537
    %v1539 = vmul.f32 %v1517, 1.442695
    %v1540 = vpow.pop %v1539
    %v1541 = vmul.f32 %v1518, 1.442695
    %v1542 = vpow.pop %v1541
    %v1543 = vmul.f32 %v1519, 1.442695
    %v1544 = vpow.pop %v1543
    %v1545 = vmul.f32 %v1520, 1.442695
    %v1546 = vpow.pop %v1545
    %v1547 = vmul.f32 %v1521, 1.442695
    %v1548 = vpow.pop %v1547
    %v1549 = vmul.f32 %v1522, 1.442695
    %v1550 = vpow.pop %v1549
    %v1551 = vmul.f32 %v1523, 1.442695
    %v1552 = vpow.pop %v1551
    %v1553 = vmul.f32 %v1524, 1.442695
    %v1554 = vpow.pop %v1553
    %v1555 = vmul.f32 %v1525, 1.442695
    %v1556 = vpow.pop %v1555
    %v1557 = vmul.f32 %v1526, 1.442695
    %v1558 = vpow.pop %v1557
    %v1559 = vadd.f32 %v1528, 1.0
    %v1560 = vadd.f32 %v1530, 1.0
    %v1561 = vadd.f32 %v1532, 1.0
    %v1562 = vadd.f32 %v1534, 1.0
    %v1563 = vadd.f32 %v1536, 1.0
    %v1564 = vadd.f32 %v1538, 1.0
    %v1565 = vadd.f32 %v1540, 1.0
    %v1566 = vadd.f32 %v1542, 1.0
    %v1567 = vadd.f32 %v1544, 1.0
    %v1568 = vadd.f32 %v1546, 1.0
    %v1569 = vadd.f32 %v1548, 1.0
    %v1570 = vadd.f32 %v1550, 1.0
    %v1571 = vadd.f32 %v1552, 1.0
    %v1572 = vadd.f32 %v1554, 1.0
    %v1573 = vadd.f32 %v1556, 1.0
    %v1574 = vadd.f32 %v1558, 1.0
    %v1575 = vrcp.pop %v1559
    %v1576 = vrcp.pop %v1560
    %v1577 = vrcp.pop %v1561
    %v1578 = vrcp.pop %v1562
    %v1579 = vrcp.pop %v1563
    %v1580 = vrcp.pop %v1564
    %v1581 = vrcp.pop %v1565
    %v1582 = vrcp.pop %v1566
    %v1583 = vrcp.pop %v1567
    %v1584 = vrcp.pop %v1568
    %v1585 = vrcp.pop %v1569
    %v1586 = vrcp.pop %v1570
    %v1587 = vrcp.pop %v1571
    %v1588 = vrcp.pop %v1572
    %v1589 = vrcp.pop %v1573
    %v1590 = vrcp.pop %v1574
    %v1591 = vsub.f32 0.0, %v1575
    %v1592 = vsub.f32 0.0, %v1576
    %v1593 = vsub.f32 0.0, %v1577
    %v1594 = vsub.f32 0.0, %v1578
    %v1595 = vsub.f32 0.0, %v1579
    %v1596 = vsub.f32 0.0, %v1580
    %v1597 = vsub.f32 0.0, %v1581
    %v1598 = vsub.f32 0.0, %v1582
    %v1599 = vsub.f32 0.0, %v1583
    %v1600 = vsub.f32 0.0, %v1584
    %v1601 = vsub.f32 0.0, %v1585
    %v1602 = vsub.f32 0.0, %v1586
    %v1603 = vsub.f32 0.0, %v1587
    %v1604 = vsub.f32 0.0, %v1588
    %v1605 = vsub.f32 0.0, %v1589
    %v1606 = vsub.f32 0.0, %v1590
    %v1607 = vmul.f32 %v1591, 1.442695
    %v1608 = vpow.pop %v1607
    %v1609 = vmul.f32 %v1592, 1.442695
    %v1610 = vpow.pop %v1609
    %v1611 = vmul.f32 %v1593, 1.442695
    %v1612 = vpow.pop %v1611
    %v1613 = vmul.f32 %v1594, 1.442695
    %v1614 = vpow.pop %v1613
    %v1615 = vmul.f32 %v1595, 1.442695
    %v1616 = vpow.pop %v1615
    %v1617 = vmul.f32 %v1596, 1.442695
    %v1618 = vpow.pop %v1617
    %v1619 = vmul.f32 %v1597, 1.442695
    %v1620 = vpow.pop %v1619
    %v1621 = vmul.f32 %v1598, 1.442695
    %v1622 = vpow.pop %v1621
    %v1623 = vmul.f32 %v1599, 1.442695
    %v1624 = vpow.pop %v1623
    %v1625 = vmul.f32 %v1600, 1.442695
    %v1626 = vpow.pop %v1625
    %v1627 = vmul.f32 %v1601, 1.442695
    %v1628 = vpow.pop %v1627
    %v1629 = vmul.f32 %v1602, 1.442695
    %v1630 = vpow.pop %v1629
    %v1631 = vmul.f32 %v1603, 1.442695
    %v1632 = vpow.pop %v1631
    %v1633 = vmul.f32 %v1604, 1.442695
    %v1634 = vpow.pop %v1633
    %v1635 = vmul.f32 %v1605, 1.442695
    %v1636 = vpow.pop %v1635
    %v1637 = vmul.f32 %v1606, 1.442695
    %v1638 = vpow.pop %v1637
    %v1639 = vadd.f32 %v1608, 1.0
    %v1640 = vadd.f32 %v1610, 1.0
    %v1641 = vadd.f32 %v1612, 1.0
    %v1642 = vadd.f32 %v1614, 1.0
    %v1643 = vadd.f32 %v1616, 1.0
    %v1644 = vadd.f32 %v1618, 1.0
    %v1645 = vadd.f32 %v1620, 1.0
    %v1646 = vadd.f32 %v1622, 1.0
    %v1647 = vadd.f32 %v1624, 1.0
    %v1648 = vadd.f32 %v1626, 1.0
    %v1649 = vadd.f32 %v1628, 1.0
    %v1650 = vadd.f32 %v1630, 1.0
    %v1651 = vadd.f32 %v1632, 1.0
    %v1652 = vadd.f32 %v1634, 1.0
    %v1653 = vadd.f32 %v1636, 1.0
    %v1654 = vadd.f32 %v1638, 1.0
    %v1655 = vrcp.pop %v1639
    %v1656 = vrcp.pop %v1640
    %v1657 = vrcp.pop %v1641
    %v1658 = vrcp.pop %v1642
    %v1659 = vrcp.pop %v1643
    %v1660 = vrcp.pop %v1644
    %v1661 = vrcp.pop %v1645
    %v1662 = vrcp.pop %v1646
    %v1663 = vrcp.pop %v1647
    %v1664 = vrcp.pop %v1648
    %v1665 = vrcp.pop %v1649
    %v1666 = vrcp.pop %v1650
    %v1667 = vrcp.pop %v1651
    %v1668 = vrcp.pop %v1652
    %v1669 = vrcp.pop %v1653
    %v1670 = vrcp.pop %v1654
    %1671 = vst [vmem:[#allocation14] sm:$0xff] %v1655
    %1672 = vst [vmem:[#allocation14 + $0x8] sm:$0xff] %v1656
    %1673 = vst [vmem:[#allocation14 + $0x10] sm:$0xff] %v1657
    %1674 = vst [vmem:[#allocation14 + $0x18] sm:$0xff] %v1658
    %1675 = vst [vmem:[#allocation14 + $0x20] sm:$0xff] %v1659
    %1676 = vst [vmem:[#allocation14 + $0x28] sm:$0xff] %v1660
    %1677 = vst [vmem:[#allocation14 + $0x30] sm:$0xff] %v1661
    %1678 = vst [vmem:[#allocation14 + $0x38] sm:$0xff] %v1662
    %1679 = vst [vmem:[#allocation14 + $0x40] sm:$0xff] %v1663
    %1680 = vst [vmem:[#allocation14 + $0x48] sm:$0xff] %v1664
    %1681 = vst [vmem:[#allocation14 + $0x50] sm:$0xff] %v1665
    %1682 = vst [vmem:[#allocation14 + $0x58] sm:$0xff] %v1666
    %1683 = vst [vmem:[#allocation14 + $0x60] sm:$0xff] %v1667
    %1684 = vst [vmem:[#allocation14 + $0x68] sm:$0xff] %v1668
    %1685 = vst [vmem:[#allocation14 + $0x70] sm:$0xff] %v1669
    %1686 = vst [vmem:[#allocation14 + $0x78] sm:$0xff] %v1670
    // Predicated region
    $region46: #{tpu_custom_call.1} parent=1 // pred_check
      _
    $region47: #{tpu_custom_call.1} parent=1 // pred_check_branch
      %1688 = sbr.rel (0) target = $region49
    $region48: #{tpu_custom_call.1} parent=1 // pred_region
      %s1690 = ssub.s32 2048, 2048
      %1691 = vsyncadd [#allocation8], %s1690
      %s1692 = sshll.u32 [#allocation14], 4
      %s1693 = int_to_ptr.vmem [resolvable:$true] %s1692
      %1698 = dma.vmem_to_hbm [thread:$0]  %s1693, 2048, %s7, [#allocation8], 128, 128, 8
    $region49: #{tpu_custom_call.1} parent=1 // pred_fallthru
      _
    // Predicated region
    $region50: #{tpu_custom_call.1} parent=1 // pred_check
      _
    $region51: #{tpu_custom_call.1} parent=1 // pred_check_branch
      %1700 = sbr.rel (0) target = $region53
    $region52: #{tpu_custom_call.1} parent=1 // pred_region
      %1701 = dma.done [#allocation8], 2048
    $region53: #{tpu_custom_call.1} parent=1 // pred_fallthru
      _
    %1702 = vsyncpa [#allocation7], 1
    %1703 = vsyncpa [#allocation10], 1
    %1704 = vsyncpa [#allocation13], 1
    %1705 = vsyncpa [#allocation8], 1

</llo_original>
